<compile_context>
chip_gen: v6e
topology: v6e:2x2x1
jax: 0.10.0
libtpu: 0.0.40
codegen_flags: <defaults>
</compile_context>

<pallas_src>
import functools

import jax
import jax.numpy as jnp
from jax import lax
from jax.experimental import pallas as pl
from jax.experimental.pallas import tpu as pltpu

_EPS = 1e-5
_LANE = 128
_BLOCK_M = 256                       # default pixel rows per grid step
_VMEM_LIMIT = 32 * 1024 * 1024       # safe on v5e / v6e / v7x scoped budgets


def _round_up(x, m):
    return (x + m - 1) // m * m


# ----------------------------- Pallas kernels ------------------------------

def _conv_stats_kernel(a_ref, w_ref, y_ref, sum_ref, sq_ref):
    """One M-tile of conv-as-matmul; accumulate per-channel sum / sum^2."""
    @pl.when(pl.program_id(0) == 0)
    def _():
        sum_ref[...] = jnp.zeros_like(sum_ref)
        sq_ref[...] = jnp.zeros_like(sq_ref)

    y = jnp.dot(a_ref[...], w_ref[...], preferred_element_type=jnp.float32)
    y_ref[...] = y.astype(y_ref.dtype)                  # bf16 writeback
    sum_ref[...] += jnp.sum(y, axis=0, keepdims=True)   # f32 statistics
    sq_ref[...] += jnp.sum(y * y, axis=0, keepdims=True)


def _bn_fold(s, q, g, b, inv_count, eps):
    """Fold batch statistics (sum / sum^2 rows) into a per-channel affine."""
    mu = s * inv_count
    var = jnp.maximum(q * inv_count - mu * mu, 0.0)
    scale = g * lax.rsqrt(var + eps)
    shift = b - mu * scale
    return scale, shift


def _bn_relu_kernel(y_ref, s_ref, q_ref, g_ref, b_ref, o_ref, *,
                    inv_count, eps):
    """In-kernel BN1 fold + affine + ReLU applied to one M-tile."""
    scale, shift = _bn_fold(s_ref[...], q_ref[...], g_ref[...], b_ref[...],
                            inv_count, eps)
    o_ref[...] = jnp.maximum(
        y_ref[...] * scale + shift, 0.0).astype(o_ref.dtype)


def _bn_add_relu_kernel(*refs, inv_count, eps, use_proj):
    """In-kernel BN2 fold + affine + shortcut (+1x1 conv) + add + ReLU."""
    if use_proj:
        y_ref, s_ref, q_ref, g_ref, b_ref, x_ref, w3_ref, b3_ref, o_ref = refs
        short = jnp.dot(x_ref[...], w3_ref[...],
                        preferred_element_type=jnp.float32) + b3_ref[...]
    else:
        y_ref, s_ref, q_ref, g_ref, b_ref, x_ref, o_ref = refs
        short = x_ref[...]
    scale, shift = _bn_fold(s_ref[...], q_ref[...], g_ref[...], b_ref[...],
                            inv_count, eps)
    y = y_ref[...] * scale + shift
    o_ref[...] = jnp.maximum(y + short, 0.0).astype(o_ref.dtype)


# ----------------------------- pallas_call wrappers -------------------------

def _row_spec(cols):
    # per-channel (1, C) vector, VMEM-resident across the M grid axis
    return pl.BlockSpec((1, cols), lambda i: (0, 0))


def _conv_stats_call(a, w, block_m):
    mp, kp = a.shape
    cp = w.shape[1]
    return pl.pallas_call(
        _conv_stats_kernel,
        out_shape=(jax.ShapeDtypeStruct((mp, cp), jnp.bfloat16),  # raw conv out
                   jax.ShapeDtypeStruct((1, cp), jnp.float32),    # sum
                   jax.ShapeDtypeStruct((1, cp), jnp.float32)),   # sum of sq
        grid=(mp // block_m,),
        in_specs=[pl.BlockSpec((block_m, kp), lambda i: (i, 0)),  # streamed A
                  pl.BlockSpec((kp, cp), lambda i: (0, 0))],      # resident W
        out_specs=(pl.BlockSpec((block_m, cp), lambda i: (i, 0)),
                   _row_spec(cp), _row_spec(cp)),                 # resident acc
        compiler_params=pltpu.CompilerParams(
            dimension_semantics=("arbitrary",),   # stats accumulate across M
            vmem_limit_bytes=_VMEM_LIMIT),
    )(a, w)


def _bn_relu_call(y_raw, s, q, g, b, inv_count, block_m, out_dtype):
    mp, cp = y_raw.shape
    return pl.pallas_call(
        functools.partial(_bn_relu_kernel, inv_count=inv_count, eps=_EPS),
        out_shape=jax.ShapeDtypeStruct((mp, cp), out_dtype),
        grid=(mp // block_m,),
        in_specs=[pl.BlockSpec((block_m, cp), lambda i: (i, 0)),
                  _row_spec(cp), _row_spec(cp), _row_spec(cp), _row_spec(cp)],
        out_specs=pl.BlockSpec((block_m, cp), lambda i: (i, 0)),
        compiler_params=pltpu.CompilerParams(
            dimension_semantics=("parallel",),    # both TCs on v7x
            vmem_limit_bytes=_VMEM_LIMIT),
    )(y_raw, s, q, g, b)


def _bn_add_relu_call(y_raw, s, q, g, b, xsc, w3, b3, inv_count, block_m):
    mp, cp = y_raw.shape
    use_proj = w3 is not None
    inputs = [y_raw, s, q, g, b, xsc] + ([w3, b3] if use_proj else [])
    in_specs = [pl.BlockSpec((block_m, cp), lambda i: (i, 0)),
                _row_spec(cp), _row_spec(cp), _row_spec(cp), _row_spec(cp),
                # shortcut tile uses the same index_map as the output tile
                pl.BlockSpec((block_m, xsc.shape[1]), lambda i: (i, 0))]
    if use_proj:
        in_specs += [pl.BlockSpec(w3.shape, lambda i: (0, 0)),    # resident W3
                     _row_spec(cp)]
    return pl.pallas_call(
        functools.partial(_bn_add_relu_kernel, inv_count=inv_count,
                          eps=_EPS, use_proj=use_proj),
        out_shape=jax.ShapeDtypeStruct((mp, cp), jnp.float32),
        grid=(mp // block_m,),
        in_specs=in_specs,
        out_specs=pl.BlockSpec((block_m, cp), lambda i: (i, 0)),
        compiler_params=pltpu.CompilerParams(
            dimension_semantics=("parallel",),
            vmem_limit_bytes=_VMEM_LIMIT),
    )(*inputs)


# ------------------------------- glue (JAX) --------------------------------

def _im2col(x_nhwc, k, stride, pad):
    """Patch extraction (layout glue).  Rows in (n, ho, wo) order."""
    n, h, w, c = x_nhwc.shape
    xp = jnp.pad(x_nhwc, ((0, 0), (pad, pad), (pad, pad), (0, 0)))
    ho = (h + 2 * pad - k) // stride + 1
    wo = (w + 2 * pad - k) // stride + 1
    cols = []
    for kh in range(k):
        for kw in range(k):
            patch = lax.slice(
                xp, (0, kh, kw, 0),
                (n, kh + stride * (ho - 1) + 1, kw + stride * (wo - 1) + 1, c),
                (1, stride, stride, 1))
            cols.append(patch.reshape(n * ho * wo, c))
    return jnp.concatenate(cols, axis=1), ho, wo


def _pad2d(a, rows, cols, dtype):
    return jnp.pad(a, ((0, rows - a.shape[0]),
                       (0, cols - a.shape[1]))).astype(dtype)


def _pad_row(v, cols):
    return jnp.pad(v.astype(jnp.float32).reshape(1, -1),
                   ((0, 0), (0, cols - v.shape[0])))


def _residual_forward_impl(x_nchw, params, strides, use1x1conv, block_m):
    n, cin, h, w = x_nchw.shape
    cout = params['w1'].shape[0]
    if not use1x1conv:
        assert strides == 1 and cin == cout, \
            "identity shortcut requires strides == 1 and cin == cout"

    x_nhwc = jnp.transpose(x_nchw, (0, 2, 3, 1)).astype(jnp.float32)
    cp = _round_up(cout, _LANE)                       # lane-dense output width

    # ---- conv1 (3x3, stride s) as matmul + batch stats ---------------------
    a1, ho, wo = _im2col(x_nhwc, 3, strides, 1)
    m = n * ho * wo
    bm = max(_LANE, min(block_m, _round_up(m, _LANE)))  # clamp to true M
    mp = _round_up(m, bm)
    k1p = _round_up(9 * cin, _LANE)
    a1p = _pad2d(a1, mp, k1p, jnp.bfloat16)
    w1m = jnp.transpose(params['w1'], (2, 3, 1, 0)).reshape(9 * cin, cout)
    w1p = _pad2d(w1m, k1p, cp, jnp.bfloat16)
    # conv bias b1 dropped: training-mode BN subtracts the batch mean, which
    # cancels a per-channel bias exactly (same for b2).
    y1_raw, s1, q1 = _conv_stats_call(a1p, w1p, bm)

    inv_count = 1.0 / m                               # true M (pad rows are 0)

    # ---- BN1 fold + affine + ReLU (in-kernel fold) --------------------------
    y1 = _bn_relu_call(y1_raw, s1, q1,
                       _pad_row(params['g1'], cp), _pad_row(params['be1'], cp),
                       inv_count, bm, jnp.bfloat16)
    y1 = y1[:m, :cout].reshape(n, ho, wo, cout)

    # ---- conv2 (3x3, stride 1) as matmul + batch stats ----------------------
    a2, _, _ = _im2col(y1, 3, 1, 1)
    k2p = _round_up(9 * cout, _LANE)
    a2p = _pad2d(a2, mp, k2p, jnp.bfloat16)
    w2m = jnp.transpose(params['w2'], (2, 3, 1, 0)).reshape(9 * cout, cout)
    w2p = _pad2d(w2m, k2p, cp, jnp.bfloat16)
    y2_raw, s2, q2 = _conv_stats_call(a2p, w2p, bm)

    # ---- shortcut + BN2 fold + affine + add + ReLU ---------------------------
    if use1x1conv:
        k3p = _round_up(cin, _LANE)
        xsc = x_nhwc[:, ::strides, ::strides, :].reshape(m, cin)
        xsc = _pad2d(xsc, mp, k3p, jnp.bfloat16)
        w3m = jnp.transpose(params['w3'].reshape(cout, cin), (1, 0))
        w3p = _pad2d(w3m, k3p, cp, jnp.bfloat16)
        b3p = _pad_row(params['b3'], cp)
    else:
        xsc = _pad2d(x_nhwc.reshape(m, cin), mp, cp, jnp.float32)
        w3p, b3p = None, None
    out2d = _bn_add_relu_call(y2_raw, s2, q2,
                              _pad_row(params['g2'], cp),
                              _pad_row(params['be2'], cp),
                              xsc, w3p, b3p, inv_count, bm)

    out = out2d[:m, :cout].reshape(n, ho, wo, cout)
    return jnp.transpose(out, (0, 3, 1, 2))          # back to NCHW


# jit the whole forward: all layout glue between pallas_calls gets fused.
residual_forward = jax.jit(
    _residual_forward_impl,
    static_argnames=('strides', 'use1x1conv', 'block_m'))


# ---------------------- deterministic parameter init -----------------------

def init_params(key, cin, cout, use1x1conv):
    ks = jax.random.split(key, 10)
    s = 0.1
    p = {
        'w1': s * jax.random.normal(ks[0], (cout, cin, 3, 3), jnp.float32),
        'b1': s * jax.random.normal(ks[1], (cout,), jnp.float32),
        'w2': s * jax.random.normal(ks[2], (cout, cout, 3, 3), jnp.float32),
        'b2': s * jax.random.normal(ks[3], (cout,), jnp.float32),
        'g1': 1.0 + s * jax.random.normal(ks[4], (cout,), jnp.float32),
        'be1': s * jax.random.normal(ks[5], (cout,), jnp.float32),
        'g2': 1.0 + s * jax.random.normal(ks[6], (cout,), jnp.float32),
        'be2': s * jax.random.normal(ks[7], (cout,), jnp.float32),
    }
    if use1x1conv:
        p['w3'] = s * jax.random.normal(ks[8], (cout, cin, 1, 1), jnp.float32)
        p['b3'] = s * jax.random.normal(ks[9], (cout,), jnp.float32)
    return p


# ----------------------------- pure-JAX reference ---------------------------

def _ref_forward(x, p, strides, use1x1conv):
    def conv(x, w, b, s, pad):
        y = lax.conv_general_dilated(x, w, (s, s), [(pad, pad), (pad, pad)],
                                     dimension_numbers=('NCHW', 'OIHW', 'NCHW'))
        return y + b.reshape(1, -1, 1, 1)

    def bn(y, g, be):
        mu = y.mean(axis=(0, 2, 3), keepdims=True)
        var = jnp.square(y - mu).mean(axis=(0, 2, 3), keepdims=True)
        return (y - mu) * lax.rsqrt(var + _EPS) * g.reshape(1, -1, 1, 1) \
            + be.reshape(1, -1, 1, 1)

    out = jax.nn.relu(bn(conv(x, p['w1'], p['b1'], strides, 1), p['g1'], p['be1']))
    out = bn(conv(out, p['w2'], p['b2'], 1, 1), p['g2'], p['be2'])
    sc = conv(x, p['w3'], p['b3'], strides, 0) if use1x1conv else x
    return jax.nn.relu(out + sc)


# ----------------------------------- main -----------------------------------

if __name__ == "__main__":
    key = jax.random.PRNGKey(0)
    k1, k2, kx = jax.random.split(key, 3)
    x = jax.random.normal(kx, (2, 4, 16, 16), jnp.float32)  # NCHW like PyTorch

    # bf16 MXU operands / bf16 raw intermediates (f32 stats & accumulation)
    # => tolerance looser than pure-f32.
    TOL = dict(atol=5e-2, rtol=5e-2)

    # Config 1: identity shortcut (cin == cout, stride 1). M = 512 -> 2 tiles.
    p1 = init_params(k1, cin=4, cout=4, use1x1conv=False)
    y1 = residual_forward(x, p1, strides=1, use1x1conv=False, block_m=_BLOCK_M)
    jax.block_until_ready(y1)
    r1 = _ref_forward(x, p1, 1, False)
    assert y1.shape == (2, 4, 16, 16)
    assert jnp.allclose(y1, r1, **TOL), float(jnp.max(jnp.abs(y1 - r1)))

    # Config 2: projection shortcut (channel expand, stride 2, 1x1 conv).
    p2 = init_params(k2, cin=4, cout=8, use1x1conv=True)
    y2 = residual_forward(x, p2, strides=2, use1x1conv=True, block_m=_BLOCK_M)
    jax.block_until_ready(y2)
    r2 = _ref_forward(x, p2, 2, True)
    assert y2.shape == (2, 8, 8, 8)
    assert jnp.allclose(y2, r2, **TOL), float(jnp.max(jnp.abs(y2 - r2)))

    print("KERNEL_OK")
</pallas_src>

<mosaic_0001>
module attributes {stable_mosaic.version = 11 : i64} {
  func.func @_bn_relu_kernel(%arg0: i32, %arg1: memref<256x128xbf16, #tpu.memory_space<vmem>>, %arg2: memref<1x128xf32, #tpu.memory_space<vmem>>, %arg3: memref<1x128xf32, #tpu.memory_space<vmem>>, %arg4: memref<1x128xf32, #tpu.memory_space<vmem>>, %arg5: memref<1x128xf32, #tpu.memory_space<vmem>>, %arg6: memref<256x128xbf16, #tpu.memory_space<vmem>>) attributes {dimension_semantics = [#tpu.dimension_semantics<parallel>], iteration_bounds = array<i64: 2>, scalar_prefetch = 0 : i64, scratch_operands = 0 : i64, tpu.core_type = #tpu.core_type<tc>, window_params = [{transform_indices = @transform_0, window_bounds = array<i64: 256, 128>}, {pipeline_mode = #tpu.pipeline_mode<synchronous>, transform_indices = @transform_1, window_bounds = array<i64: 1, 128>}, {pipeline_mode = #tpu.pipeline_mode<synchronous>, transform_indices = @transform_2, window_bounds = array<i64: 1, 128>}, {pipeline_mode = #tpu.pipeline_mode<synchronous>, transform_indices = @transform_3, window_bounds = array<i64: 1, 128>}, {pipeline_mode = #tpu.pipeline_mode<synchronous>, transform_indices = @transform_4, window_bounds = array<i64: 1, 128>}, {transform_indices = @transform_5, window_bounds = array<i64: 256, 128>}]} {
    %c0 = arith.constant 0 : index
    %c0_0 = arith.constant 0 : index
    %0 = vector.load %arg2[%c0, %c0_0] : memref<1x128xf32, #tpu.memory_space<vmem>>, vector<1x128xf32>
    %c0_1 = arith.constant 0 : index
    %c0_2 = arith.constant 0 : index
    %1 = vector.load %arg3[%c0_1, %c0_2] : memref<1x128xf32, #tpu.memory_space<vmem>>, vector<1x128xf32>
    %c0_3 = arith.constant 0 : index
    %c0_4 = arith.constant 0 : index
    %2 = vector.load %arg4[%c0_3, %c0_4] : memref<1x128xf32, #tpu.memory_space<vmem>>, vector<1x128xf32>
    %c0_5 = arith.constant 0 : index
    %c0_6 = arith.constant 0 : index
    %3 = vector.load %arg5[%c0_5, %c0_6] : memref<1x128xf32, #tpu.memory_space<vmem>>, vector<1x128xf32>
    %cst = arith.constant 0.001953125 : f32
    %4 = vector.broadcast %cst : f32 to vector<1x128xf32>
    %5 = arith.mulf %0, %4 : vector<1x128xf32>
    %cst_7 = arith.constant 0.001953125 : f32
    %6 = vector.broadcast %cst_7 : f32 to vector<1x128xf32>
    %7 = arith.mulf %1, %6 : vector<1x128xf32>
    %8 = arith.mulf %5, %5 : vector<1x128xf32>
    %9 = arith.subf %7, %8 : vector<1x128xf32>
    %cst_8 = arith.constant 0.000000e+00 : f32
    %10 = vector.broadcast %cst_8 : f32 to vector<1x128xf32>
    %11 = arith.maximumf %9, %10 : vector<1x128xf32>
    %cst_9 = arith.constant 9.99999974E-6 : f32
    %12 = vector.broadcast %cst_9 : f32 to vector<1x128xf32>
    %13 = arith.addf %11, %12 : vector<1x128xf32>
    %14 = math.rsqrt %13 : vector<1x128xf32>
    %15 = arith.mulf %2, %14 : vector<1x128xf32>
    %16 = arith.mulf %5, %15 : vector<1x128xf32>
    %17 = arith.subf %3, %16 : vector<1x128xf32>
    %c0_10 = arith.constant 0 : index
    %c0_11 = arith.constant 0 : index
    %18 = vector.load %arg1[%c0_10, %c0_11] : memref<256x128xbf16, #tpu.memory_space<vmem>>, vector<256x128xbf16>
    %19 = arith.extf %18 : vector<256x128xbf16> to vector<256x128xf32>
    %20 = vector.broadcast %15 : vector<1x128xf32> to vector<256x128xf32>
    %21 = arith.mulf %19, %20 : vector<256x128xf32>
    %22 = vector.broadcast %17 : vector<1x128xf32> to vector<256x128xf32>
    %23 = arith.addf %21, %22 : vector<256x128xf32>
    %cst_12 = arith.constant 0.000000e+00 : f32
    %24 = vector.broadcast %cst_12 : f32 to vector<256x128xf32>
    %25 = arith.maximumf %23, %24 : vector<256x128xf32>
    %26 = arith.truncf %25 : vector<256x128xf32> to vector<256x128xbf16>
    %c0_13 = arith.constant 0 : index
    %c0_14 = arith.constant 0 : index
    %27 = vector.load %arg6[%c0_13, %c0_14] : memref<256x128xbf16, #tpu.memory_space<vmem>>, vector<256x128xbf16>
    tpu.vector_store %arg6[%c0_13, %c0_14], %26 {strides = array<i32>} : memref<256x128xbf16, #tpu.memory_space<vmem>>, vector<256x128xbf16>,
    return
  }
  func.func @transform_0(%arg0: i32) -> (i32, i32) {
    %c0_i32 = arith.constant 0 : i32
    %c0_i32_0 = arith.constant 0 : i32
    return %arg0, %c0_i32 : i32, i32
  }
  func.func @transform_1(%arg0: i32) -> (i32, i32) {
    %c0_i32 = arith.constant 0 : i32
    %c0_i32_0 = arith.constant 0 : i32
    %c0_i32_1 = arith.constant 0 : i32
    return %c0_i32, %c0_i32_0 : i32, i32
  }
  func.func @transform_2(%arg0: i32) -> (i32, i32) {
    %c0_i32 = arith.constant 0 : i32
    %c0_i32_0 = arith.constant 0 : i32
    %c0_i32_1 = arith.constant 0 : i32
    return %c0_i32, %c0_i32_0 : i32, i32
  }
  func.func @transform_3(%arg0: i32) -> (i32, i32) {
    %c0_i32 = arith.constant 0 : i32
    %c0_i32_0 = arith.constant 0 : i32
    %c0_i32_1 = arith.constant 0 : i32
    return %c0_i32, %c0_i32_0 : i32, i32
  }
  func.func @transform_4(%arg0: i32) -> (i32, i32) {
    %c0_i32 = arith.constant 0 : i32
    %c0_i32_0 = arith.constant 0 : i32
    %c0_i32_1 = arith.constant 0 : i32
    return %c0_i32, %c0_i32_0 : i32, i32
  }
  func.func @transform_5(%arg0: i32) -> (i32, i32) {
    %c0_i32 = arith.constant 0 : i32
    %c0_i32_0 = arith.constant 0 : i32
    return %arg0, %c0_i32 : i32, i32
  }
}

module attributes {stable_mosaic.version = 11 : i64} {
  func.func @_conv_stats_kernel(%arg0: i32, %arg1: memref<256x128xbf16, #tpu.memory_space<vmem>>, %arg2: memref<128x128xbf16, #tpu.memory_space<vmem>>, %arg3: memref<256x128xbf16, #tpu.memory_space<vmem>>, %arg4: memref<1x128xf32, #tpu.memory_space<vmem>>, %arg5: memref<1x128xf32, #tpu.memory_space<vmem>>) attributes {dimension_semantics = [#tpu.dimension_semantics<arbitrary>], iteration_bounds = array<i64: 2>, scalar_prefetch = 0 : i64, scratch_operands = 0 : i64, tpu.core_type = #tpu.core_type<tc>, window_params = [{transform_indices = @transform_0, window_bounds = array<i64: 256, 128>}, {pipeline_mode = #tpu.pipeline_mode<synchronous>, transform_indices = @transform_1, window_bounds = array<i64: 128, 128>}, {transform_indices = @transform_2, window_bounds = array<i64: 256, 128>}, {pipeline_mode = #tpu.pipeline_mode<synchronous>, transform_indices = @transform_3, window_bounds = array<i64: 1, 128>}, {pipeline_mode = #tpu.pipeline_mode<synchronous>, transform_indices = @transform_4, window_bounds = array<i64: 1, 128>}]} {
    %c0_i32 = arith.constant 0 : i32
    %0 = arith.cmpi eq, %arg0, %c0_i32 : i32
    %1 = arith.extui %0 : i1 to i32
    %c0_i32_0 = arith.constant 0 : i32
    %2 = arith.cmpi ne, %1, %c0_i32_0 : i32
    scf.if %2 {
      %cst_16 = arith.constant 0.000000e+00 : f32
      %19 = vector.broadcast %cst_16 : f32 to vector<1x128xf32>
      %c0_17 = arith.constant 0 : index
      %c0_18 = arith.constant 0 : index
      %20 = vector.load %arg4[%c0_17, %c0_18] : memref<1x128xf32, #tpu.memory_space<vmem>>, vector<1x128xf32>
      tpu.vector_store %arg4[%c0_17, %c0_18], %19 {strides = array<i32>} : memref<1x128xf32, #tpu.memory_space<vmem>>, vector<1x128xf32>,
      %cst_19 = arith.constant 0.000000e+00 : f32
      %21 = vector.broadcast %cst_19 : f32 to vector<1x128xf32>
      %c0_20 = arith.constant 0 : index
      %c0_21 = arith.constant 0 : index
      %22 = vector.load %arg5[%c0_20, %c0_21] : memref<1x128xf32, #tpu.memory_space<vmem>>, vector<1x128xf32>
      tpu.vector_store %arg5[%c0_20, %c0_21], %21 {strides = array<i32>} : memref<1x128xf32, #tpu.memory_space<vmem>>, vector<1x128xf32>,
    } else {
    }
    %c0 = arith.constant 0 : index
    %c0_1 = arith.constant 0 : index
    %3 = vector.load %arg1[%c0, %c0_1] : memref<256x128xbf16, #tpu.memory_space<vmem>>, vector<256x128xbf16>
    %c0_2 = arith.constant 0 : index
    %c0_3 = arith.constant 0 : index
    %4 = vector.load %arg2[%c0_2, %c0_3] : memref<128x128xbf16, #tpu.memory_space<vmem>>, vector<128x128xbf16>
    %cst = arith.constant dense<0.000000e+00> : vector<256x128xf32>
    %5 = tpu.matmul %3, %4, %cst {dimension_numbers = #tpu.dot_dimension_numbers<[1], [0], [0], [1], [0, 0, 1, 1], [], []>} : vector<256x128xbf16>, vector<128x128xbf16>, vector<256x128xf32> -> vector<256x128xf32>
    %6 = arith.truncf %5 : vector<256x128xf32> to vector<256x128xbf16>
    %c0_4 = arith.constant 0 : index
    %c0_5 = arith.constant 0 : index
    %7 = vector.load %arg3[%c0_4, %c0_5] : memref<256x128xbf16, #tpu.memory_space<vmem>>, vector<256x128xbf16>
    tpu.vector_store %arg3[%c0_4, %c0_5], %6 {strides = array<i32>} : memref<256x128xbf16, #tpu.memory_space<vmem>>, vector<256x128xbf16>,
    %c0_6 = arith.constant 0 : index
    %c0_7 = arith.constant 0 : index
    %8 = vector.load %arg4[%c0_6, %c0_7] : memref<1x128xf32, #tpu.memory_space<vmem>>, vector<1x128xf32>
    %cst_8 = arith.constant dense<0.000000e+00> : vector<128xf32>
    %9 = vector.multi_reduction <add>, %5, %cst_8 [0] : vector<256x128xf32> to vector<128xf32>
    %10 = vector.shape_cast %9 : vector<128xf32> to vector<1x128xf32>
    %11 = arith.addf %8, %10 : vector<1x128xf32>
    %c0_9 = arith.constant 0 : index
    %c0_10 = arith.constant 0 : index
    %12 = vector.load %arg4[%c0_9, %c0_10] : memref<1x128xf32, #tpu.memory_space<vmem>>, vector<1x128xf32>
    tpu.vector_store %arg4[%c0_9, %c0_10], %11 {strides = array<i32>} : memref<1x128xf32, #tpu.memory_space<vmem>>, vector<1x128xf32>,
    %c0_11 = arith.constant 0 : index
    %c0_12 = arith.constant 0 : index
    %13 = vector.load %arg5[%c0_11, %c0_12] : memref<1x128xf32, #tpu.memory_space<vmem>>, vector<1x128xf32>
    %14 = arith.mulf %5, %5 : vector<256x128xf32>
    %cst_13 = arith.constant dense<0.000000e+00> : vector<128xf32>
    %15 = vector.multi_reduction <add>, %14, %cst_13 [0] : vector<256x128xf32> to vector<128xf32>
    %16 = vector.shape_cast %15 : vector<128xf32> to vector<1x128xf32>
    %17 = arith.addf %13, %16 : vector<1x128xf32>
    %c0_14 = arith.constant 0 : index
    %c0_15 = arith.constant 0 : index
    %18 = vector.load %arg5[%c0_14, %c0_15] : memref<1x128xf32, #tpu.memory_space<vmem>>, vector<1x128xf32>
    tpu.vector_store %arg5[%c0_14, %c0_15], %17 {strides = array<i32>} : memref<1x128xf32, #tpu.memory_space<vmem>>, vector<1x128xf32>,
    return
  }
  func.func @transform_0(%arg0: i32) -> (i32, i32) {
    %c0_i32 = arith.constant 0 : i32
    %c0_i32_0 = arith.constant 0 : i32
    return %arg0, %c0_i32 : i32, i32
  }
  func.func @transform_1(%arg0: i32) -> (i32, i32) {
    %c0_i32 = arith.constant 0 : i32
    %c0_i32_0 = arith.constant 0 : i32
    %c0_i32_1 = arith.constant 0 : i32
    return %c0_i32, %c0_i32_0 : i32, i32
  }
  func.func @transform_2(%arg0: i32) -> (i32, i32) {
    %c0_i32 = arith.constant 0 : i32
    %c0_i32_0 = arith.constant 0 : i32
    return %arg0, %c0_i32 : i32, i32
  }
  func.func @transform_3(%arg0: i32) -> (i32, i32) {
    %c0_i32 = arith.constant 0 : i32
    %c0_i32_0 = arith.constant 0 : i32
    %c0_i32_1 = arith.constant 0 : i32
    return %c0_i32, %c0_i32_0 : i32, i32
  }
  func.func @transform_4(%arg0: i32) -> (i32, i32) {
    %c0_i32 = arith.constant 0 : i32
    %c0_i32_0 = arith.constant 0 : i32
    %c0_i32_1 = arith.constant 0 : i32
    return %c0_i32, %c0_i32_0 : i32, i32
  }
}

module attributes {stable_mosaic.version = 11 : i64} {
  func.func @_bn_add_relu_kernel(%arg0: i32, %arg1: memref<256x128xbf16, #tpu.memory_space<vmem>>, %arg2: memref<1x128xf32, #tpu.memory_space<vmem>>, %arg3: memref<1x128xf32, #tpu.memory_space<vmem>>, %arg4: memref<1x128xf32, #tpu.memory_space<vmem>>, %arg5: memref<1x128xf32, #tpu.memory_space<vmem>>, %arg6: memref<256x128xf32, #tpu.memory_space<vmem>>, %arg7: memref<256x128xf32, #tpu.memory_space<vmem>>) attributes {dimension_semantics = [#tpu.dimension_semantics<parallel>], iteration_bounds = array<i64: 2>, scalar_prefetch = 0 : i64, scratch_operands = 0 : i64, tpu.core_type = #tpu.core_type<tc>, window_params = [{transform_indices = @transform_0, window_bounds = array<i64: 256, 128>}, {pipeline_mode = #tpu.pipeline_mode<synchronous>, transform_indices = @transform_1, window_bounds = array<i64: 1, 128>}, {pipeline_mode = #tpu.pipeline_mode<synchronous>, transform_indices = @transform_2, window_bounds = array<i64: 1, 128>}, {pipeline_mode = #tpu.pipeline_mode<synchronous>, transform_indices = @transform_3, window_bounds = array<i64: 1, 128>}, {pipeline_mode = #tpu.pipeline_mode<synchronous>, transform_indices = @transform_4, window_bounds = array<i64: 1, 128>}, {transform_indices = @transform_5, window_bounds = array<i64: 256, 128>}, {transform_indices = @transform_6, window_bounds = array<i64: 256, 128>}]} {
    %c0 = arith.constant 0 : index
    %c0_0 = arith.constant 0 : index
    %0 = vector.load %arg6[%c0, %c0_0] : memref<256x128xf32, #tpu.memory_space<vmem>>, vector<256x128xf32>
    %c0_1 = arith.constant 0 : index
    %c0_2 = arith.constant 0 : index
    %1 = vector.load %arg2[%c0_1, %c0_2] : memref<1x128xf32, #tpu.memory_space<vmem>>, vector<1x128xf32>
    %c0_3 = arith.constant 0 : index
    %c0_4 = arith.constant 0 : index
    %2 = vector.load %arg3[%c0_3, %c0_4] : memref<1x128xf32, #tpu.memory_space<vmem>>, vector<1x128xf32>
    %c0_5 = arith.constant 0 : index
    %c0_6 = arith.constant 0 : index
    %3 = vector.load %arg4[%c0_5, %c0_6] : memref<1x128xf32, #tpu.memory_space<vmem>>, vector<1x128xf32>
    %c0_7 = arith.constant 0 : index
    %c0_8 = arith.constant 0 : index
    %4 = vector.load %arg5[%c0_7, %c0_8] : memref<1x128xf32, #tpu.memory_space<vmem>>, vector<1x128xf32>
    %cst = arith.constant 0.001953125 : f32
    %5 = vector.broadcast %cst : f32 to vector<1x128xf32>
    %6 = arith.mulf %1, %5 : vector<1x128xf32>
    %cst_9 = arith.constant 0.001953125 : f32
    %7 = vector.broadcast %cst_9 : f32 to vector<1x128xf32>
    %8 = arith.mulf %2, %7 : vector<1x128xf32>
    %9 = arith.mulf %6, %6 : vector<1x128xf32>
    %10 = arith.subf %8, %9 : vector<1x128xf32>
    %cst_10 = arith.constant 0.000000e+00 : f32
    %11 = vector.broadcast %cst_10 : f32 to vector<1x128xf32>
    %12 = arith.maximumf %10, %11 : vector<1x128xf32>
    %cst_11 = arith.constant 9.99999974E-6 : f32
    %13 = vector.broadcast %cst_11 : f32 to vector<1x128xf32>
    %14 = arith.addf %12, %13 : vector<1x128xf32>
    %15 = math.rsqrt %14 : vector<1x128xf32>
    %16 = arith.mulf %3, %15 : vector<1x128xf32>
    %17 = arith.mulf %6, %16 : vector<1x128xf32>
    %18 = arith.subf %4, %17 : vector<1x128xf32>
    %c0_12 = arith.constant 0 : index
    %c0_13 = arith.constant 0 : index
    %19 = vector.load %arg1[%c0_12, %c0_13] : memref<256x128xbf16, #tpu.memory_space<vmem>>, vector<256x128xbf16>
    %20 = arith.extf %19 : vector<256x128xbf16> to vector<256x128xf32>
    %21 = vector.broadcast %16 : vector<1x128xf32> to vector<256x128xf32>
    %22 = arith.mulf %20, %21 : vector<256x128xf32>
    %23 = vector.broadcast %18 : vector<1x128xf32> to vector<256x128xf32>
    %24 = arith.addf %22, %23 : vector<256x128xf32>
    %25 = arith.addf %24, %0 : vector<256x128xf32>
    %cst_14 = arith.constant 0.000000e+00 : f32
    %26 = vector.broadcast %cst_14 : f32 to vector<256x128xf32>
    %27 = arith.maximumf %25, %26 : vector<256x128xf32>
    %c0_15 = arith.constant 0 : index
    %c0_16 = arith.constant 0 : index
    %28 = vector.load %arg7[%c0_15, %c0_16] : memref<256x128xf32, #tpu.memory_space<vmem>>, vector<256x128xf32>
    tpu.vector_store %arg7[%c0_15, %c0_16], %27 {strides = array<i32>} : memref<256x128xf32, #tpu.memory_space<vmem>>, vector<256x128xf32>,
    return
  }
  func.func @transform_0(%arg0: i32) -> (i32, i32) {
    %c0_i32 = arith.constant 0 : i32
    %c0_i32_0 = arith.constant 0 : i32
    return %arg0, %c0_i32 : i32, i32
  }
  func.func @transform_1(%arg0: i32) -> (i32, i32) {
    %c0_i32 = arith.constant 0 : i32
    %c0_i32_0 = arith.constant 0 : i32
    %c0_i32_1 = arith.constant 0 : i32
    return %c0_i32, %c0_i32_0 : i32, i32
  }
  func.func @transform_2(%arg0: i32) -> (i32, i32) {
    %c0_i32 = arith.constant 0 : i32
    %c0_i32_0 = arith.constant 0 : i32
    %c0_i32_1 = arith.constant 0 : i32
    return %c0_i32, %c0_i32_0 : i32, i32
  }
  func.func @transform_3(%arg0: i32) -> (i32, i32) {
    %c0_i32 = arith.constant 0 : i32
    %c0_i32_0 = arith.constant 0 : i32
    %c0_i32_1 = arith.constant 0 : i32
    return %c0_i32, %c0_i32_0 : i32, i32
  }
  func.func @transform_4(%arg0: i32) -> (i32, i32) {
    %c0_i32 = arith.constant 0 : i32
    %c0_i32_0 = arith.constant 0 : i32
    %c0_i32_1 = arith.constant 0 : i32
    return %c0_i32, %c0_i32_0 : i32, i32
  }
  func.func @transform_5(%arg0: i32) -> (i32, i32) {
    %c0_i32 = arith.constant 0 : i32
    %c0_i32_0 = arith.constant 0 : i32
    return %arg0, %c0_i32 : i32, i32
  }
  func.func @transform_6(%arg0: i32) -> (i32, i32) {
    %c0_i32 = arith.constant 0 : i32
    %c0_i32_0 = arith.constant 0 : i32
    return %arg0, %c0_i32 : i32, i32
  }
}

</mosaic_0001>

<llo_original>
// kernel: _residual_forward_impl.5
$region0: #{_residual_forward_impl.5}
  #allocation0 [shape = 'u32[]', space=smem, size = 0x4, offset = 0x4, fixed_abs, tag = 'smem constant byte address 0x4 - core index']
  #allocation1 [shape = 'u32[144,128]{1,0:T(1,128)}', space=vmem, size = 0x12000, scoped, tag = 'internal scratch']
  %s0 = inlined_call_operand.vmem [shape: bf16[512,128], index: 0, kind: input, shape index: {}]
  %s1 = inlined_call_operand.vmem [shape: f32[1,128], index: 1, kind: input, shape index: {}]
  %s2 = inlined_call_operand.vmem [shape: f32[1,128], index: 2, kind: input, shape index: {}]
  %s3 = inlined_call_operand.vmem [shape: f32[1,128], index: 3, kind: input, shape index: {}]
  %s4 = inlined_call_operand.vmem [shape: f32[1,128], index: 4, kind: input, shape index: {}]
  %s5 = inlined_call_operand.vmem [shape: bf16[512,128], index: 5, kind: output, shape index: {}]
  %s6 = sld [smem:[#allocation0]]
  $region53: #{_residual_forward_impl.5} parent=0
    _
  %s8 = ssub.s32 1, %s6
  %s9 = scalar_select 0, %s8, %s6
  loop: start=0, step=1, limit=4
  $region2: #{_residual_forward_impl.5} parent=0 // loop_pre_header
    _
  $region3: #{_residual_forward_impl.5} parent=0 // loop_header
    %s11 = sphi 0, %s15
    %p12 = scmp.ge.s32.totalorder %s11, 4
    %s21 = sphi 0, %s23
    %s24 = sphi 0, %s21
    %s25 = sphi 0, %s24
    %s41 = sphi 0, %s25
    %s45 = sphi 0, %s45
    %s47 = sphi 0, %s45
    %s48 = sphi 0, %s47
    %s62 = sphi 0, %s48
    %s66 = sphi 0, %s66
    %s68 = sphi 0, %s66
    %s69 = sphi 0, %s68
    %s83 = sphi 0, %s69
    %s87 = sphi 0, %s87
    %s89 = sphi 0, %s87
    %s90 = sphi 0, %s89
    %s104 = sphi 0, %s90
    %s108 = sphi 0, %s108
    %s110 = sphi 0, %s108
    %s111 = sphi 0, %s110
    %s125 = sphi 0, %s111
    %s131 = sphi 0, %s133
    %s134 = sphi 0, %s131
    %s135 = sphi 0, %s134
    %s151 = sphi 0, %s135
  $region4: #{_residual_forward_impl.5} parent=0 // loop_header_branch
    %14 = sbr.rel (%p12) target = $region8
  $region5: #{_residual_forward_impl.5} parent=0 // loop_body
    %s16 = ssub.s32 %s11, 1
    %s17 = ssub.s32 %s11, 2
    %s18 = sadd.s32 %s11, 1
    %s19 = ssub.s32 %s11, %s18
    %p20 = scmp.eq.s32.totalorder %s19, 0
    %s22 = sadd.s32 %s21, 1
    %s23 = scalar_select %p20, %s21, %s22
    %p26 = pneg %p20
    %p27 = scmp.eq.s32.totalorder %s11, 1
    %p28 = por %p26, %p27
    %p29 = scmp.ne.s32.totalorder %s21, %s24
    %p30 = scmp.eq.s32.totalorder %s11, 0
    %p31 = por %p29, %p30
    %p32 = scmp.ne.s32.totalorder %s21, %s24
    %p33 = scmp.eq.s32.totalorder %s16, 1
    %p34 = por %p32, %p33
    %p35 = scmp.ne.s32.totalorder %s24, %s25
    %p36 = scmp.eq.s32.totalorder %s16, 0
    %p37 = por %p35, %p36
    %p38 = scmp.ne.s32.totalorder %s24, %s25
    %p39 = scmp.eq.s32.totalorder %s17, 1
    %p40 = por %p38, %p39
    %p42 = scmp.ne.s32.totalorder %s25, %s41
    %p43 = scmp.eq.s32.totalorder %s17, 0
    %p44 = por %p42, %p43
    %s46 = sadd.s32 %s45, 1
    %p49 = scmp.eq.s32.totalorder %s11, 1
    %p50 = scmp.ne.s32.totalorder %s45, %s47
    %p51 = scmp.eq.s32.totalorder %s11, 0
    %p52 = por %p50, %p51
    %p53 = scmp.ne.s32.totalorder %s45, %s47
    %p54 = scmp.eq.s32.totalorder %s16, 1
    %p55 = por %p53, %p54
    %p56 = scmp.ne.s32.totalorder %s47, %s48
    %p57 = scmp.eq.s32.totalorder %s16, 0
    %p58 = por %p56, %p57
    %p59 = scmp.ne.s32.totalorder %s47, %s48
    %p60 = scmp.eq.s32.totalorder %s17, 1
    %p61 = por %p59, %p60
    %p63 = scmp.ne.s32.totalorder %s48, %s62
    %p64 = scmp.eq.s32.totalorder %s17, 0
    %p65 = por %p63, %p64
    %s67 = sadd.s32 %s66, 1
    %p70 = scmp.eq.s32.totalorder %s11, 1
    %p71 = scmp.ne.s32.totalorder %s66, %s68
    %p72 = scmp.eq.s32.totalorder %s11, 0
    %p73 = por %p71, %p72
    %p74 = scmp.ne.s32.totalorder %s66, %s68
    %p75 = scmp.eq.s32.totalorder %s16, 1
    %p76 = por %p74, %p75
    %p77 = scmp.ne.s32.totalorder %s68, %s69
    %p78 = scmp.eq.s32.totalorder %s16, 0
    %p79 = por %p77, %p78
    %p80 = scmp.ne.s32.totalorder %s68, %s69
    %p81 = scmp.eq.s32.totalorder %s17, 1
    %p82 = por %p80, %p81
    %p84 = scmp.ne.s32.totalorder %s69, %s83
    %p85 = scmp.eq.s32.totalorder %s17, 0
    %p86 = por %p84, %p85
    %s88 = sadd.s32 %s87, 1
    %p91 = scmp.eq.s32.totalorder %s11, 1
    %p92 = scmp.ne.s32.totalorder %s87, %s89
    %p93 = scmp.eq.s32.totalorder %s11, 0
    %p94 = por %p92, %p93
    %p95 = scmp.ne.s32.totalorder %s87, %s89
    %p96 = scmp.eq.s32.totalorder %s16, 1
    %p97 = por %p95, %p96
    %p98 = scmp.ne.s32.totalorder %s89, %s90
    %p99 = scmp.eq.s32.totalorder %s16, 0
    %p100 = por %p98, %p99
    %p101 = scmp.ne.s32.totalorder %s89, %s90
    %p102 = scmp.eq.s32.totalorder %s17, 1
    %p103 = por %p101, %p102
    %p105 = scmp.ne.s32.totalorder %s90, %s104
    %p106 = scmp.eq.s32.totalorder %s17, 0
    %p107 = por %p105, %p106
    %s109 = sadd.s32 %s108, 1
    %p112 = scmp.eq.s32.totalorder %s11, 1
    %p113 = scmp.ne.s32.totalorder %s108, %s110
    %p114 = scmp.eq.s32.totalorder %s11, 0
    %p115 = por %p113, %p114
    %p116 = scmp.ne.s32.totalorder %s108, %s110
    %p117 = scmp.eq.s32.totalorder %s16, 1
    %p118 = por %p116, %p117
    %p119 = scmp.ne.s32.totalorder %s110, %s111
    %p120 = scmp.eq.s32.totalorder %s16, 0
    %p121 = por %p119, %p120
    %p122 = scmp.ne.s32.totalorder %s110, %s111
    %p123 = scmp.eq.s32.totalorder %s17, 1
    %p124 = por %p122, %p123
    %p126 = scmp.ne.s32.totalorder %s111, %s125
    %p127 = scmp.eq.s32.totalorder %s17, 0
    %p128 = por %p126, %p127
    %s129 = ssub.s32 %s11, %s18
    %p130 = scmp.eq.s32.totalorder %s129, 0
    %s132 = sadd.s32 %s131, 1
    %s133 = scalar_select %p130, %s131, %s132
    %p136 = pneg %p130
    %p137 = scmp.eq.s32.totalorder %s11, 1
    %p138 = por %p136, %p137
    %p139 = scmp.ne.s32.totalorder %s131, %s134
    %p140 = scmp.eq.s32.totalorder %s11, 0
    %p141 = por %p139, %p140
    %p142 = scmp.ne.s32.totalorder %s131, %s134
    %p143 = scmp.eq.s32.totalorder %s16, 1
    %p144 = por %p142, %p143
    %p145 = scmp.ne.s32.totalorder %s134, %s135
    %p146 = scmp.eq.s32.totalorder %s16, 0
    %p147 = por %p145, %p146
    %p148 = scmp.ne.s32.totalorder %s134, %s135
    %p149 = scmp.eq.s32.totalorder %s17, 1
    %p150 = por %p148, %p149
    %p152 = scmp.ne.s32.totalorder %s135, %s151
    %p153 = scmp.eq.s32.totalorder %s17, 0
    %p154 = por %p152, %p153
    %p155 = scmp.le.s32.totalorder 1, %s11
    %p156 = scmp.lt.s32.totalorder %s11, 3
    %p157 = pnand %p155, %p156
    %p158 = pneg %p157
    // Predicated region
    $region9: #{_residual_forward_impl.5} parent=5 // pred_check
      _
    $region10: #{_residual_forward_impl.5} parent=5 // pred_check_branch
      %160 = sbr.rel (%p157) target = $region12
    $region11: #{_residual_forward_impl.5} parent=5 // pred_region
      %s161 = ssub.s32 %s11, 1
      // Predicated region
      $region13: #{_residual_forward_impl.5} parent=11 // pred_check
        %p162 = pneg %p58
      $region14: #{_residual_forward_impl.5} parent=11 // pred_check_branch
        %164 = sbr.rel (%p162) target = $region16
      $region15: #{_residual_forward_impl.5} parent=11 // pred_region
        _
      $region16: #{_residual_forward_impl.5} parent=11 // pred_fallthru
        _
      // Predicated region
      $region17: #{_residual_forward_impl.5} parent=11 // pred_check
        %p165 = pneg %p79
      $region18: #{_residual_forward_impl.5} parent=11 // pred_check_branch
        %167 = sbr.rel (%p165) target = $region20
      $region19: #{_residual_forward_impl.5} parent=11 // pred_region
        _
      $region20: #{_residual_forward_impl.5} parent=11 // pred_fallthru
        _
      // Predicated region
      $region21: #{_residual_forward_impl.5} parent=11 // pred_check
        %p168 = pneg %p100
      $region22: #{_residual_forward_impl.5} parent=11 // pred_check_branch
        %170 = sbr.rel (%p168) target = $region24
      $region23: #{_residual_forward_impl.5} parent=11 // pred_region
        _
      $region24: #{_residual_forward_impl.5} parent=11 // pred_fallthru
        _
      // Predicated region
      $region25: #{_residual_forward_impl.5} parent=11 // pred_check
        %p171 = pneg %p121
      $region26: #{_residual_forward_impl.5} parent=11 // pred_check_branch
        %173 = sbr.rel (%p171) target = $region28
      $region27: #{_residual_forward_impl.5} parent=11 // pred_region
        _
      $region28: #{_residual_forward_impl.5} parent=11 // pred_fallthru
        _
    $region12: #{_residual_forward_impl.5} parent=5 // pred_fallthru
      _
    %p174 = scmp.lt.s32.totalorder %s11, 2
    // Predicated region
    $region29: #{_residual_forward_impl.5} parent=5 // pred_check
      %p175 = pneg %p174
    $region30: #{_residual_forward_impl.5} parent=5 // pred_check_branch
      %177 = sbr.rel (%p175) target = $region32
    $region31: #{_residual_forward_impl.5} parent=5 // pred_region
      // Predicated region
      $region33: #{_residual_forward_impl.5} parent=31 // pred_check
        %p178 = pneg %p31
      $region34: #{_residual_forward_impl.5} parent=31 // pred_check_branch
        %180 = sbr.rel (%p178) target = $region36
      $region35: #{_residual_forward_impl.5} parent=31 // pred_region
        %s181 = smul.u32 32, %s11
        %p182 = scmp.lt.s32.totalorder %s181, 63
        %s183 = scalar_select %p182, %s181, 63
        %s184 = smul.addr %s183, 4
        %s185 = scalar_lea.vmem %s0, %s184
        %s186 = smul.u32 32, %s11
      $region36: #{_residual_forward_impl.5} parent=31 // pred_fallthru
        _
    $region32: #{_residual_forward_impl.5} parent=5 // pred_fallthru
      _
    %p187 = scmp.le.s32.totalorder 1, %s11
    %p188 = scmp.lt.s32.totalorder %s11, 3
    %p189 = pnand %p187, %p188
    %p190 = pneg %p189
    // Predicated region
    $region37: #{_residual_forward_impl.5} parent=5 // pred_check
      _
    $region38: #{_residual_forward_impl.5} parent=5 // pred_check_branch
      %192 = sbr.rel (%p189) target = $region40
    $region39: #{_residual_forward_impl.5} parent=5 // pred_region
      %s193 = ssub.s32 %s11, 1
      %s194 = smul.u32 32, %s16
      %p195 = scmp.lt.s32.totalorder %s194, 63
      %s196 = scalar_select %p195, %s194, 63
      %s197 = smul.addr %s196, 4
      %s198 = scalar_lea.vmem %s0, %s197
      %p199 = pneg %p37
      %p200 = pneg %p34
      %p201 = pneg %p58
      %p202 = pneg %p55
      %p203 = pneg %p79
      %p204 = pneg %p76
      %p205 = pneg %p100
      %p206 = pneg %p97
      %p207 = pneg %p121
      %p208 = pneg %p118
      %p209 = pneg %p147
      %p210 = pneg %p144
      %s211 = smul.u32 32, %s16
      %p212 = scmp.lt.s32.totalorder %s211, 63
      %s213 = scalar_select %p212, %s211, 63
      %s214 = smul.addr %s213, 4
      %s215 = scalar_lea.vmem %s5, %s214
      %s216 = smul.u32 32, %s16
      %p217 = scmp.lt.s32.totalorder %s216, 63
      %s218 = scalar_select %p217, %s216, 63
      %s219 = smul.addr %s218, 4
      %s220 = scalar_lea.vmem %s0, %s219
      %s221 = smul.u32 32, %s16
      %s222 = smul.u32 32, %s16
      %p223 = scmp.lt.s32.totalorder %s222, 63
      %s224 = scalar_select %p223, %s222, 63
      %s225 = smul.addr %s224, 4
      %s226 = scalar_lea.vmem %s5, %s225
      %s227 = smul.u32 32, %s16
      %v228 = vld [vmem:[%s1] sm:$0x1]
      %v229 = vld [vmem:[%s2] sm:$0x1]
      %v230 = vld [vmem:[%s3] sm:$0x1]
      %v231 = vld [vmem:[%s4] sm:$0x1]
      %v232 = vmul.f32 %v228, 0.001953125
      %v233 = vmul.f32 %v229, 0.001953125
      %v234 = vmul.f32 %v232, %v232
      %v235 = vsub.f32 %v233, %v234
      %v236 = vmax.f32 %v235, 0.0
      %v237 = vadd.f32 %v236, 1e-05
      %v238 = vrsqrt.pop %v237
      %v239 = vmul.f32 %v230, %v238
      %v240 = vmul.f32 %v232, %v239
      %v241 = vsub.f32 %v231, %v240
      %v242 = vld [vmem:[%s220] sm:$0xf]
      %v243 = vld [vmem:[%s220 + $0x4] sm:$0xf]
      %v244 = vld [vmem:[%s220 + $0x8] sm:$0xf]
      %v245 = vld [vmem:[%s220 + $0xc] sm:$0xf]
      %v246 = vld [vmem:[%s220 + $0x10] sm:$0xf]
      %v247 = vld [vmem:[%s220 + $0x14] sm:$0xf]
      %v248 = vld [vmem:[%s220 + $0x18] sm:$0xf]
      %v249 = vld [vmem:[%s220 + $0x1c] sm:$0xf]
      %v250 = vld [vmem:[%s220 + $0x20] sm:$0xf]
      %v251 = vld [vmem:[%s220 + $0x24] sm:$0xf]
      %v252 = vld [vmem:[%s220 + $0x28] sm:$0xf]
      %v253 = vld [vmem:[%s220 + $0x2c] sm:$0xf]
      %v254 = vld [vmem:[%s220 + $0x30] sm:$0xf]
      %v255 = vld [vmem:[%s220 + $0x34] sm:$0xf]
      %v256 = vld [vmem:[%s220 + $0x38] sm:$0xf]
      %v257 = vld [vmem:[%s220 + $0x3c] sm:$0xf]
      %v258 = vld [vmem:[%s220 + $0x40] sm:$0xf]
      %v259 = vld [vmem:[%s220 + $0x44] sm:$0xf]
      %v260 = vld [vmem:[%s220 + $0x48] sm:$0xf]
      %v261 = vld [vmem:[%s220 + $0x4c] sm:$0xf]
      %v262 = vld [vmem:[%s220 + $0x50] sm:$0xf]
      %v263 = vld [vmem:[%s220 + $0x54] sm:$0xf]
      %v264 = vld [vmem:[%s220 + $0x58] sm:$0xf]
      %v265 = vld [vmem:[%s220 + $0x5c] sm:$0xf]
      %v266 = vld [vmem:[%s220 + $0x60] sm:$0xf]
      %v267 = vld [vmem:[%s220 + $0x64] sm:$0xf]
      %v268 = vld [vmem:[%s220 + $0x68] sm:$0xf]
      %v269 = vld [vmem:[%s220 + $0x6c] sm:$0xf]
      %v270 = vld [vmem:[%s220 + $0x70] sm:$0xf]
      %v271 = vld [vmem:[%s220 + $0x74] sm:$0xf]
      %v272 = vld [vmem:[%s220 + $0x78] sm:$0xf]
      %v273 = vld [vmem:[%s220 + $0x7c] sm:$0xf]
      %v274 = vunpack.c.l.bf16 %v242
      %v275 = vunpack.c.l.bf16 %v243
      %v276 = vunpack.c.l.bf16 %v244
      %v277 = vunpack.c.l.bf16 %v245
      %v278 = vunpack.c.l.bf16 %v246
      %v279 = vunpack.c.l.bf16 %v247
      %v280 = vunpack.c.l.bf16 %v248
      %v281 = vunpack.c.l.bf16 %v249
      %v282 = vunpack.c.l.bf16 %v250
      %v283 = vunpack.c.l.bf16 %v251
      %v284 = vunpack.c.l.bf16 %v252
      %v285 = vunpack.c.l.bf16 %v253
      %v286 = vunpack.c.l.bf16 %v254
      %v287 = vunpack.c.l.bf16 %v255
      %v288 = vunpack.c.l.bf16 %v256
      %v289 = vunpack.c.l.bf16 %v257
      %v290 = vunpack.c.l.bf16 %v258
      %v291 = vunpack.c.l.bf16 %v259
      %v292 = vunpack.c.l.bf16 %v260
      %v293 = vunpack.c.l.bf16 %v261
      %v294 = vunpack.c.l.bf16 %v262
      %v295 = vunpack.c.l.bf16 %v263
      %v296 = vunpack.c.l.bf16 %v264
      %v297 = vunpack.c.l.bf16 %v265
      %v298 = vunpack.c.l.bf16 %v266
      %v299 = vunpack.c.l.bf16 %v267
      %v300 = vunpack.c.l.bf16 %v268
      %v301 = vunpack.c.l.bf16 %v269
      %v302 = vunpack.c.l.bf16 %v270
      %v303 = vunpack.c.l.bf16 %v271
      %v304 = vunpack.c.l.bf16 %v272
      %v305 = vunpack.c.l.bf16 %v273
      %v307 = vlaneseq
      %v308 = vshrl.u32 %v307, 7
      %v309 = vsub.s32 0, %v308
      %v310 = vrot.slane %v239, %v309
      %v312 = vmul.f32 %v274, %v310
      %v313 = vmul.f32 %v275, %v310
      %v314 = vmul.f32 %v276, %v310
      %v315 = vmul.f32 %v277, %v310
      %v316 = vmul.f32 %v278, %v310
      %v317 = vmul.f32 %v279, %v310
      %v318 = vmul.f32 %v280, %v310
      %v319 = vmul.f32 %v281, %v310
      %v320 = vmul.f32 %v282, %v310
      %v321 = vmul.f32 %v283, %v310
      %v322 = vmul.f32 %v284, %v310
      %v323 = vmul.f32 %v285, %v310
      %v324 = vmul.f32 %v286, %v310
      %v325 = vmul.f32 %v287, %v310
      %v326 = vmul.f32 %v288, %v310
      %v327 = vmul.f32 %v289, %v310
      %v328 = vmul.f32 %v290, %v310
      %v329 = vmul.f32 %v291, %v310
      %v330 = vmul.f32 %v292, %v310
      %v331 = vmul.f32 %v293, %v310
      %v332 = vmul.f32 %v294, %v310
      %v333 = vmul.f32 %v295, %v310
      %v334 = vmul.f32 %v296, %v310
      %v335 = vmul.f32 %v297, %v310
      %v336 = vmul.f32 %v298, %v310
      %v337 = vmul.f32 %v299, %v310
      %v338 = vmul.f32 %v300, %v310
      %v339 = vmul.f32 %v301, %v310
      %v340 = vmul.f32 %v302, %v310
      %v341 = vmul.f32 %v303, %v310
      %v342 = vmul.f32 %v304, %v310
      %v343 = vmul.f32 %v305, %v310
      %v345 = vlaneseq
      %v346 = vshrl.u32 %v345, 7
      %v347 = vsub.s32 0, %v346
      %v348 = vrot.slane %v241, %v347
      %v350 = vadd.f32 %v312, %v348
      %v351 = vadd.f32 %v313, %v348
      %v352 = vadd.f32 %v314, %v348
      %v353 = vadd.f32 %v315, %v348
      %v354 = vadd.f32 %v316, %v348
      %v355 = vadd.f32 %v317, %v348
      %v356 = vadd.f32 %v318, %v348
      %v357 = vadd.f32 %v319, %v348
      %v358 = vadd.f32 %v320, %v348
      %v359 = vadd.f32 %v321, %v348
      %v360 = vadd.f32 %v322, %v348
      %v361 = vadd.f32 %v323, %v348
      %v362 = vadd.f32 %v324, %v348
      %v363 = vadd.f32 %v325, %v348
      %v364 = vadd.f32 %v326, %v348
      %v365 = vadd.f32 %v327, %v348
      %v366 = vadd.f32 %v328, %v348
      %v367 = vadd.f32 %v329, %v348
      %v368 = vadd.f32 %v330, %v348
      %v369 = vadd.f32 %v331, %v348
      %v370 = vadd.f32 %v332, %v348
      %v371 = vadd.f32 %v333, %v348
      %v372 = vadd.f32 %v334, %v348
      %v373 = vadd.f32 %v335, %v348
      %v374 = vadd.f32 %v336, %v348
      %v375 = vadd.f32 %v337, %v348
      %v376 = vadd.f32 %v338, %v348
      %v377 = vadd.f32 %v339, %v348
      %v378 = vadd.f32 %v340, %v348
      %v379 = vadd.f32 %v341, %v348
      %v380 = vadd.f32 %v342, %v348
      %v381 = vadd.f32 %v343, %v348
      %v382 = vmax.f32 %v350, 0.0
      %v383 = vmax.f32 %v351, 0.0
      %v384 = vmax.f32 %v352, 0.0
      %v385 = vmax.f32 %v353, 0.0
      %v386 = vmax.f32 %v354, 0.0
      %v387 = vmax.f32 %v355, 0.0
      %v388 = vmax.f32 %v356, 0.0
      %v389 = vmax.f32 %v357, 0.0
      %v390 = vmax.f32 %v358, 0.0
      %v391 = vmax.f32 %v359, 0.0
      %v392 = vmax.f32 %v360, 0.0
      %v393 = vmax.f32 %v361, 0.0
      %v394 = vmax.f32 %v362, 0.0
      %v395 = vmax.f32 %v363, 0.0
      %v396 = vmax.f32 %v364, 0.0
      %v397 = vmax.f32 %v365, 0.0
      %v398 = vmax.f32 %v366, 0.0
      %v399 = vmax.f32 %v367, 0.0
      %v400 = vmax.f32 %v368, 0.0
      %v401 = vmax.f32 %v369, 0.0
      %v402 = vmax.f32 %v370, 0.0
      %v403 = vmax.f32 %v371, 0.0
      %v404 = vmax.f32 %v372, 0.0
      %v405 = vmax.f32 %v373, 0.0
      %v406 = vmax.f32 %v374, 0.0
      %v407 = vmax.f32 %v375, 0.0
      %v408 = vmax.f32 %v376, 0.0
      %v409 = vmax.f32 %v377, 0.0
      %v410 = vmax.f32 %v378, 0.0
      %v411 = vmax.f32 %v379, 0.0
      %v412 = vmax.f32 %v380, 0.0
      %v413 = vmax.f32 %v381, 0.0
      %v414 = vpack.c.bf16 %v383, %v382
      %v415 = vpack.c.bf16 %v385, %v384
      %v416 = vpack.c.bf16 %v387, %v386
      %v417 = vpack.c.bf16 %v389, %v388
      %v418 = vpack.c.bf16 %v391, %v390
      %v419 = vpack.c.bf16 %v393, %v392
      %v420 = vpack.c.bf16 %v395, %v394
      %v421 = vpack.c.bf16 %v397, %v396
      %v422 = vpack.c.bf16 %v399, %v398
      %v423 = vpack.c.bf16 %v401, %v400
      %v424 = vpack.c.bf16 %v403, %v402
      %v425 = vpack.c.bf16 %v405, %v404
      %v426 = vpack.c.bf16 %v407, %v406
      %v427 = vpack.c.bf16 %v409, %v408
      %v428 = vpack.c.bf16 %v411, %v410
      %v429 = vpack.c.bf16 %v413, %v412
      %v446 = vunpack.c.l.b16 %v414
      %v447 = vunpack.c.h.b16 %v414
      %v448 = vunpack.c.l.b16 %v415
      %v449 = vunpack.c.h.b16 %v415
      %v450 = vunpack.c.l.b16 %v416
      %v451 = vunpack.c.h.b16 %v416
      %v452 = vunpack.c.l.b16 %v417
      %v453 = vunpack.c.h.b16 %v417
      %v454 = vunpack.c.l.b16 %v418
      %v455 = vunpack.c.h.b16 %v418
      %v456 = vunpack.c.l.b16 %v419
      %v457 = vunpack.c.h.b16 %v419
      %v458 = vunpack.c.l.b16 %v420
      %v459 = vunpack.c.h.b16 %v420
      %v460 = vunpack.c.l.b16 %v421
      %v461 = vunpack.c.h.b16 %v421
      %v462 = vunpack.c.l.b16 %v422
      %v463 = vunpack.c.h.b16 %v422
      %v464 = vunpack.c.l.b16 %v423
      %v465 = vunpack.c.h.b16 %v423
      %v466 = vunpack.c.l.b16 %v424
      %v467 = vunpack.c.h.b16 %v424
      %v468 = vunpack.c.l.b16 %v425
      %v469 = vunpack.c.h.b16 %v425
      %v470 = vunpack.c.l.b16 %v426
      %v471 = vunpack.c.h.b16 %v426
      %v472 = vunpack.c.l.b16 %v427
      %v473 = vunpack.c.h.b16 %v427
      %v474 = vunpack.c.l.b16 %v428
      %v475 = vunpack.c.h.b16 %v428
      %v476 = vunpack.c.l.b16 %v429
      %v477 = vunpack.c.h.b16 %v429
      %v478 = vpack.c.b16 %v446, %v446
      %v479 = vpack.c.b16 %v447, %v447
      %v480 = vpack.c.b16 %v448, %v448
      %v481 = vpack.c.b16 %v449, %v449
      %v482 = vpack.c.b16 %v450, %v450
      %v483 = vpack.c.b16 %v451, %v451
      %v484 = vpack.c.b16 %v452, %v452
      %v485 = vpack.c.b16 %v453, %v453
      %v486 = vpack.c.b16 %v454, %v454
      %v487 = vpack.c.b16 %v455, %v455
      %v488 = vpack.c.b16 %v456, %v456
      %v489 = vpack.c.b16 %v457, %v457
      %v490 = vpack.c.b16 %v458, %v458
      %v491 = vpack.c.b16 %v459, %v459
      %v492 = vpack.c.b16 %v460, %v460
      %v493 = vpack.c.b16 %v461, %v461
      %v494 = vpack.c.b16 %v462, %v462
      %v495 = vpack.c.b16 %v463, %v463
      %v496 = vpack.c.b16 %v464, %v464
      %v497 = vpack.c.b16 %v465, %v465
      %v498 = vpack.c.b16 %v466, %v466
      %v499 = vpack.c.b16 %v467, %v467
      %v500 = vpack.c.b16 %v468, %v468
      %v501 = vpack.c.b16 %v469, %v469
      %v502 = vpack.c.b16 %v470, %v470
      %v503 = vpack.c.b16 %v471, %v471
      %v504 = vpack.c.b16 %v472, %v472
      %v505 = vpack.c.b16 %v473, %v473
      %v506 = vpack.c.b16 %v474, %v474
      %v507 = vpack.c.b16 %v475, %v475
      %v508 = vpack.c.b16 %v476, %v476
      %v509 = vpack.c.b16 %v477, %v477
      %542 = vst [vmem:[%s226] sm:$0xf] %v478
      %543 = vst [vmem:[%s226 + $0x4] sm:$0xf] %v479
      %544 = vst [vmem:[%s226 + $0x8] sm:$0xf] %v480
      %545 = vst [vmem:[%s226 + $0xc] sm:$0xf] %v481
      %546 = vst [vmem:[%s226 + $0x10] sm:$0xf] %v482
      %547 = vst [vmem:[%s226 + $0x14] sm:$0xf] %v483
      %548 = vst [vmem:[%s226 + $0x18] sm:$0xf] %v484
      %549 = vst [vmem:[%s226 + $0x1c] sm:$0xf] %v485
      %550 = vst [vmem:[%s226 + $0x20] sm:$0xf] %v486
      %551 = vst [vmem:[%s226 + $0x24] sm:$0xf] %v487
      %552 = vst [vmem:[%s226 + $0x28] sm:$0xf] %v488
      %553 = vst [vmem:[%s226 + $0x2c] sm:$0xf] %v489
      %554 = vst [vmem:[%s226 + $0x30] sm:$0xf] %v490
      %555 = vst [vmem:[%s226 + $0x34] sm:$0xf] %v491
      %556 = vst [vmem:[%s226 + $0x38] sm:$0xf] %v492
      %557 = vst [vmem:[%s226 + $0x3c] sm:$0xf] %v493
      %558 = vst [vmem:[%s226 + $0x40] sm:$0xf] %v494
      %559 = vst [vmem:[%s226 + $0x44] sm:$0xf] %v495
      %560 = vst [vmem:[%s226 + $0x48] sm:$0xf] %v496
      %561 = vst [vmem:[%s226 + $0x4c] sm:$0xf] %v497
      %562 = vst [vmem:[%s226 + $0x50] sm:$0xf] %v498
      %563 = vst [vmem:[%s226 + $0x54] sm:$0xf] %v499
      %564 = vst [vmem:[%s226 + $0x58] sm:$0xf] %v500
      %565 = vst [vmem:[%s226 + $0x5c] sm:$0xf] %v501
      %566 = vst [vmem:[%s226 + $0x60] sm:$0xf] %v502
      %567 = vst [vmem:[%s226 + $0x64] sm:$0xf] %v503
      %568 = vst [vmem:[%s226 + $0x68] sm:$0xf] %v504
      %569 = vst [vmem:[%s226 + $0x6c] sm:$0xf] %v505
      %570 = vst [vmem:[%s226 + $0x70] sm:$0xf] %v506
      %571 = vst [vmem:[%s226 + $0x74] sm:$0xf] %v507
      %572 = vst [vmem:[%s226 + $0x78] sm:$0xf] %v508
      %573 = vst [vmem:[%s226 + $0x7c] sm:$0xf] %v509
      %s574 = smul.u32 32, %s16
      %p575 = scmp.lt.s32.totalorder %s574, 63
      %s576 = scalar_select %p575, %s574, 63
      %s577 = smul.addr %s576, 4
      %s578 = scalar_lea.vmem %s5, %s577
      // Predicated region
      $region41: #{_residual_forward_impl.5} parent=39 // pred_check
        %p579 = pneg %p144
      $region42: #{_residual_forward_impl.5} parent=39 // pred_check_branch
        %581 = sbr.rel (%p579) target = $region44
      $region43: #{_residual_forward_impl.5} parent=39 // pred_region
        %s582 = smul.u32 32, %s16
      $region44: #{_residual_forward_impl.5} parent=39 // pred_fallthru
        _
    $region40: #{_residual_forward_impl.5} parent=5 // pred_fallthru
      _
    %p583 = scmp.le.s32.totalorder 2, %s11
    // Predicated region
    $region45: #{_residual_forward_impl.5} parent=5 // pred_check
      %p584 = pneg %p583
    $region46: #{_residual_forward_impl.5} parent=5 // pred_check_branch
      %586 = sbr.rel (%p584) target = $region48
    $region47: #{_residual_forward_impl.5} parent=5 // pred_region
      %s587 = ssub.s32 %s11, 2
      // Predicated region
      $region49: #{_residual_forward_impl.5} parent=47 // pred_check
        %p588 = pneg %p150
      $region50: #{_residual_forward_impl.5} parent=47 // pred_check_branch
        %590 = sbr.rel (%p588) target = $region52
      $region51: #{_residual_forward_impl.5} parent=47 // pred_region
        %s591 = smul.u32 32, %s17
        %p592 = scmp.lt.s32.totalorder %s591, 63
        %s593 = scalar_select %p592, %s591, 63
        %s594 = smul.addr %s593, 4
        %s595 = scalar_lea.vmem %s5, %s594
      $region52: #{_residual_forward_impl.5} parent=47 // pred_fallthru
        _
    $region48: #{_residual_forward_impl.5} parent=5 // pred_fallthru
      _
  $region6: #{_residual_forward_impl.5} parent=0 // loop_footer
    %s15 = sadd.s32 1, %s11
  $region7: #{_residual_forward_impl.5} parent=0 // loop_footer_branch
    %10 = sbr.rel target = $region3
  $region8: #{_residual_forward_impl.5} parent=0 // loop_exit
    _

// kernel: _residual_forward_impl.4
$region0: #{_residual_forward_impl.4}
  #allocation0 [shape = 'u32[]', space=smem, size = 0x4, offset = 0x4, fixed_abs, tag = 'smem constant byte address 0x4 - core index']
  #allocation1 [shape = 'u32[144,128]{1,0:T(1,128)}', space=vmem, size = 0x12000, scoped, tag = 'internal scratch']
  %s0 = inlined_call_operand.vmem [shape: bf16[512,128], index: 0, kind: input, shape index: {}]
  %s1 = inlined_call_operand.vmem [shape: bf16[128,128], index: 1, kind: input, shape index: {}]
  %s2 = inlined_call_operand.vmem [shape: bf16[512,128], index: 2, kind: output, shape index: {0}]
  %s3 = inlined_call_operand.vmem [shape: f32[1,128], index: 3, kind: output, shape index: {1}]
  %s4 = inlined_call_operand.vmem [shape: f32[1,128], index: 4, kind: output, shape index: {2}]
  %5 = xla_tuple %s2, %s3, %s4
  %s6 = sld [smem:[#allocation0]]
  $region61: #{_residual_forward_impl.4} parent=0
    _
  %s8 = ssub.s32 1, %s6
  %s9 = scalar_select 0, %s8, %s6
  loop: start=0, step=1, limit=4
  $region2: #{_residual_forward_impl.4} parent=0 // loop_pre_header
    _
  $region3: #{_residual_forward_impl.4} parent=0 // loop_header
    %s11 = sphi 0, %s15
    %p12 = scmp.ge.s32.totalorder %s11, 4
    %s21 = sphi 0, %s23
    %s24 = sphi 0, %s21
    %s25 = sphi 0, %s24
    %s41 = sphi 0, %s25
    %s45 = sphi 0, %s45
    %s47 = sphi 0, %s45
    %s48 = sphi 0, %s47
    %s62 = sphi 0, %s48
    %s68 = sphi 0, %s70
    %s71 = sphi 0, %s68
    %s72 = sphi 0, %s71
    %s88 = sphi 0, %s72
    %s92 = sphi 0, %s92
    %s94 = sphi 0, %s92
    %s95 = sphi 0, %s94
    %s109 = sphi 0, %s95
    %s113 = sphi 0, %s113
    %s115 = sphi 0, %s113
    %s116 = sphi 0, %s115
    %s130 = sphi 0, %s116
  $region4: #{_residual_forward_impl.4} parent=0 // loop_header_branch
    %14 = sbr.rel (%p12) target = $region8
  $region5: #{_residual_forward_impl.4} parent=0 // loop_body
    %s16 = ssub.s32 %s11, 1
    %s17 = ssub.s32 %s11, 2
    %s18 = sadd.s32 %s11, 1
    %s19 = ssub.s32 %s11, %s18
    %p20 = scmp.eq.s32.totalorder %s19, 0
    %s22 = sadd.s32 %s21, 1
    %s23 = scalar_select %p20, %s21, %s22
    %p26 = pneg %p20
    %p27 = scmp.eq.s32.totalorder %s11, 1
    %p28 = por %p26, %p27
    %p29 = scmp.ne.s32.totalorder %s21, %s24
    %p30 = scmp.eq.s32.totalorder %s11, 0
    %p31 = por %p29, %p30
    %p32 = scmp.ne.s32.totalorder %s21, %s24
    %p33 = scmp.eq.s32.totalorder %s16, 1
    %p34 = por %p32, %p33
    %p35 = scmp.ne.s32.totalorder %s24, %s25
    %p36 = scmp.eq.s32.totalorder %s16, 0
    %p37 = por %p35, %p36
    %p38 = scmp.ne.s32.totalorder %s24, %s25
    %p39 = scmp.eq.s32.totalorder %s17, 1
    %p40 = por %p38, %p39
    %p42 = scmp.ne.s32.totalorder %s25, %s41
    %p43 = scmp.eq.s32.totalorder %s17, 0
    %p44 = por %p42, %p43
    %s46 = sadd.s32 %s45, 1
    %p49 = scmp.eq.s32.totalorder %s11, 1
    %p50 = scmp.ne.s32.totalorder %s45, %s47
    %p51 = scmp.eq.s32.totalorder %s11, 0
    %p52 = por %p50, %p51
    %p53 = scmp.ne.s32.totalorder %s45, %s47
    %p54 = scmp.eq.s32.totalorder %s16, 1
    %p55 = por %p53, %p54
    %p56 = scmp.ne.s32.totalorder %s47, %s48
    %p57 = scmp.eq.s32.totalorder %s16, 0
    %p58 = por %p56, %p57
    %p59 = scmp.ne.s32.totalorder %s47, %s48
    %p60 = scmp.eq.s32.totalorder %s17, 1
    %p61 = por %p59, %p60
    %p63 = scmp.ne.s32.totalorder %s48, %s62
    %p64 = scmp.eq.s32.totalorder %s17, 0
    %p65 = por %p63, %p64
    %s66 = ssub.s32 %s11, %s18
    %p67 = scmp.eq.s32.totalorder %s66, 0
    %s69 = sadd.s32 %s68, 1
    %s70 = scalar_select %p67, %s68, %s69
    %p73 = pneg %p67
    %p74 = scmp.eq.s32.totalorder %s11, 1
    %p75 = por %p73, %p74
    %p76 = scmp.ne.s32.totalorder %s68, %s71
    %p77 = scmp.eq.s32.totalorder %s11, 0
    %p78 = por %p76, %p77
    %p79 = scmp.ne.s32.totalorder %s68, %s71
    %p80 = scmp.eq.s32.totalorder %s16, 1
    %p81 = por %p79, %p80
    %p82 = scmp.ne.s32.totalorder %s71, %s72
    %p83 = scmp.eq.s32.totalorder %s16, 0
    %p84 = por %p82, %p83
    %p85 = scmp.ne.s32.totalorder %s71, %s72
    %p86 = scmp.eq.s32.totalorder %s17, 1
    %p87 = por %p85, %p86
    %p89 = scmp.ne.s32.totalorder %s72, %s88
    %p90 = scmp.eq.s32.totalorder %s17, 0
    %p91 = por %p89, %p90
    %s93 = sadd.s32 %s92, 1
    %p96 = scmp.eq.s32.totalorder %s11, 1
    %p97 = scmp.ne.s32.totalorder %s92, %s94
    %p98 = scmp.eq.s32.totalorder %s11, 0
    %p99 = por %p97, %p98
    %p100 = scmp.ne.s32.totalorder %s92, %s94
    %p101 = scmp.eq.s32.totalorder %s16, 1
    %p102 = por %p100, %p101
    %p103 = scmp.ne.s32.totalorder %s94, %s95
    %p104 = scmp.eq.s32.totalorder %s16, 0
    %p105 = por %p103, %p104
    %p106 = scmp.ne.s32.totalorder %s94, %s95
    %p107 = scmp.eq.s32.totalorder %s17, 1
    %p108 = por %p106, %p107
    %p110 = scmp.ne.s32.totalorder %s95, %s109
    %p111 = scmp.eq.s32.totalorder %s17, 0
    %p112 = por %p110, %p111
    %s114 = sadd.s32 %s113, 1
    %p117 = scmp.eq.s32.totalorder %s11, 1
    %p118 = scmp.ne.s32.totalorder %s113, %s115
    %p119 = scmp.eq.s32.totalorder %s11, 0
    %p120 = por %p118, %p119
    %p121 = scmp.ne.s32.totalorder %s113, %s115
    %p122 = scmp.eq.s32.totalorder %s16, 1
    %p123 = por %p121, %p122
    %p124 = scmp.ne.s32.totalorder %s115, %s116
    %p125 = scmp.eq.s32.totalorder %s16, 0
    %p126 = por %p124, %p125
    %p127 = scmp.ne.s32.totalorder %s115, %s116
    %p128 = scmp.eq.s32.totalorder %s17, 1
    %p129 = por %p127, %p128
    %p131 = scmp.ne.s32.totalorder %s116, %s130
    %p132 = scmp.eq.s32.totalorder %s17, 0
    %p133 = por %p131, %p132
    %p134 = scmp.le.s32.totalorder 1, %s11
    %p135 = scmp.lt.s32.totalorder %s11, 3
    %p136 = pnand %p134, %p135
    %p137 = pneg %p136
    // Predicated region
    $region9: #{_residual_forward_impl.4} parent=5 // pred_check
      _
    $region10: #{_residual_forward_impl.4} parent=5 // pred_check_branch
      %139 = sbr.rel (%p136) target = $region12
    $region11: #{_residual_forward_impl.4} parent=5 // pred_region
      %s140 = ssub.s32 %s11, 1
      // Predicated region
      $region13: #{_residual_forward_impl.4} parent=11 // pred_check
        %p141 = pneg %p58
      $region14: #{_residual_forward_impl.4} parent=11 // pred_check_branch
        %143 = sbr.rel (%p141) target = $region16
      $region15: #{_residual_forward_impl.4} parent=11 // pred_region
        _
      $region16: #{_residual_forward_impl.4} parent=11 // pred_fallthru
        _
    $region12: #{_residual_forward_impl.4} parent=5 // pred_fallthru
      _
    %p144 = scmp.lt.s32.totalorder %s11, 2
    // Predicated region
    $region17: #{_residual_forward_impl.4} parent=5 // pred_check
      %p145 = pneg %p144
    $region18: #{_residual_forward_impl.4} parent=5 // pred_check_branch
      %147 = sbr.rel (%p145) target = $region20
    $region19: #{_residual_forward_impl.4} parent=5 // pred_region
      // Predicated region
      $region21: #{_residual_forward_impl.4} parent=19 // pred_check
        %p148 = pneg %p31
      $region22: #{_residual_forward_impl.4} parent=19 // pred_check_branch
        %150 = sbr.rel (%p148) target = $region24
      $region23: #{_residual_forward_impl.4} parent=19 // pred_region
        %s151 = smul.u32 32, %s11
        %p152 = scmp.lt.s32.totalorder %s151, 63
        %s153 = scalar_select %p152, %s151, 63
        %s154 = smul.addr %s153, 4
        %s155 = scalar_lea.vmem %s0, %s154
        %s156 = smul.u32 32, %s11
      $region24: #{_residual_forward_impl.4} parent=19 // pred_fallthru
        _
    $region20: #{_residual_forward_impl.4} parent=5 // pred_fallthru
      _
    %p157 = scmp.le.s32.totalorder 1, %s11
    %p158 = scmp.lt.s32.totalorder %s11, 3
    %p159 = pnand %p157, %p158
    %p160 = pneg %p159
    // Predicated region
    $region25: #{_residual_forward_impl.4} parent=5 // pred_check
      _
    $region26: #{_residual_forward_impl.4} parent=5 // pred_check_branch
      %162 = sbr.rel (%p159) target = $region28
    $region27: #{_residual_forward_impl.4} parent=5 // pred_region
      %s163 = ssub.s32 %s11, 1
      %s164 = smul.u32 32, %s16
      %p165 = scmp.lt.s32.totalorder %s164, 63
      %s166 = scalar_select %p165, %s164, 63
      %s167 = smul.addr %s166, 4
      %s168 = scalar_lea.vmem %s0, %s167
      %p169 = pneg %p37
      %p170 = pneg %p34
      %p171 = pneg %p58
      %p172 = pneg %p55
      %p173 = pneg %p84
      %p174 = pneg %p81
      %s175 = smul.u32 32, %s16
      %p176 = scmp.lt.s32.totalorder %s175, 63
      %s177 = scalar_select %p176, %s175, 63
      %s178 = smul.addr %s177, 4
      %s179 = scalar_lea.vmem %s2, %s178
      %p180 = pneg %p105
      %p181 = pneg %p102
      %p182 = pneg %p126
      %p183 = pneg %p123
      %s184 = smul.u32 32, %s16
      %p185 = scmp.lt.s32.totalorder %s184, 63
      %s186 = scalar_select %p185, %s184, 63
      %s187 = smul.addr %s186, 4
      %s188 = scalar_lea.vmem %s0, %s187
      %s189 = smul.u32 32, %s16
      %s190 = smul.u32 32, %s16
      %p191 = scmp.lt.s32.totalorder %s190, 63
      %s192 = scalar_select %p191, %s190, 63
      %s193 = smul.addr %s192, 4
      %s194 = scalar_lea.vmem %s2, %s193
      %s195 = smul.u32 32, %s16
      %p197 = scmp.eq.s32.totalorder %s16, 0
      // Predicated region
      $region29: #{_residual_forward_impl.4} parent=27 // pred_check
        %p198 = pneg %p197
      $region30: #{_residual_forward_impl.4} parent=27 // pred_check_branch
        %200 = sbr.rel (%p198) target = $region32
      $region31: #{_residual_forward_impl.4} parent=27 // pred_region
        %201 = vst [vmem:[%s3] sm:$0x1] 0.0
        %202 = vst [vmem:[%s4] sm:$0x1] 0.0
      $region32: #{_residual_forward_impl.4} parent=27 // pred_fallthru
        _
      %v203 = vld [vmem:[%s188] sm:$0xf]
      %v204 = vld [vmem:[%s188 + $0x4] sm:$0xf]
      %v205 = vld [vmem:[%s188 + $0x8] sm:$0xf]
      %v206 = vld [vmem:[%s188 + $0xc] sm:$0xf]
      %v207 = vld [vmem:[%s188 + $0x10] sm:$0xf]
      %v208 = vld [vmem:[%s188 + $0x14] sm:$0xf]
      %v209 = vld [vmem:[%s188 + $0x18] sm:$0xf]
      %v210 = vld [vmem:[%s188 + $0x1c] sm:$0xf]
      %v211 = vld [vmem:[%s188 + $0x20] sm:$0xf]
      %v212 = vld [vmem:[%s188 + $0x24] sm:$0xf]
      %v213 = vld [vmem:[%s188 + $0x28] sm:$0xf]
      %v214 = vld [vmem:[%s188 + $0x2c] sm:$0xf]
      %v215 = vld [vmem:[%s188 + $0x30] sm:$0xf]
      %v216 = vld [vmem:[%s188 + $0x34] sm:$0xf]
      %v217 = vld [vmem:[%s188 + $0x38] sm:$0xf]
      %v218 = vld [vmem:[%s188 + $0x3c] sm:$0xf]
      %v219 = vld [vmem:[%s188 + $0x40] sm:$0xf]
      %v220 = vld [vmem:[%s188 + $0x44] sm:$0xf]
      %v221 = vld [vmem:[%s188 + $0x48] sm:$0xf]
      %v222 = vld [vmem:[%s188 + $0x4c] sm:$0xf]
      %v223 = vld [vmem:[%s188 + $0x50] sm:$0xf]
      %v224 = vld [vmem:[%s188 + $0x54] sm:$0xf]
      %v225 = vld [vmem:[%s188 + $0x58] sm:$0xf]
      %v226 = vld [vmem:[%s188 + $0x5c] sm:$0xf]
      %v227 = vld [vmem:[%s188 + $0x60] sm:$0xf]
      %v228 = vld [vmem:[%s188 + $0x64] sm:$0xf]
      %v229 = vld [vmem:[%s188 + $0x68] sm:$0xf]
      %v230 = vld [vmem:[%s188 + $0x6c] sm:$0xf]
      %v231 = vld [vmem:[%s188 + $0x70] sm:$0xf]
      %v232 = vld [vmem:[%s188 + $0x74] sm:$0xf]
      %v233 = vld [vmem:[%s188 + $0x78] sm:$0xf]
      %v234 = vld [vmem:[%s188 + $0x7c] sm:$0xf]
      %v235 = vld [vmem:[%s1] sm:$0xf]
      %v236 = vld [vmem:[%s1 + $0x4] sm:$0xf]
      %v237 = vld [vmem:[%s1 + $0x8] sm:$0xf]
      %v238 = vld [vmem:[%s1 + $0xc] sm:$0xf]
      %v239 = vld [vmem:[%s1 + $0x10] sm:$0xf]
      %v240 = vld [vmem:[%s1 + $0x14] sm:$0xf]
      %v241 = vld [vmem:[%s1 + $0x18] sm:$0xf]
      %v242 = vld [vmem:[%s1 + $0x1c] sm:$0xf]
      %v243 = vld [vmem:[%s1 + $0x20] sm:$0xf]
      %v244 = vld [vmem:[%s1 + $0x24] sm:$0xf]
      %v245 = vld [vmem:[%s1 + $0x28] sm:$0xf]
      %v246 = vld [vmem:[%s1 + $0x2c] sm:$0xf]
      %v247 = vld [vmem:[%s1 + $0x30] sm:$0xf]
      %v248 = vld [vmem:[%s1 + $0x34] sm:$0xf]
      %v249 = vld [vmem:[%s1 + $0x38] sm:$0xf]
      %v250 = vld [vmem:[%s1 + $0x3c] sm:$0xf]
      %v283 = vunpack.c.l.b16 %v203
      %v284 = vunpack.c.l.b16 %v204
      %v285 = vunpack.c.l.b16 %v205
      %v286 = vunpack.c.l.b16 %v206
      %v287 = vunpack.c.l.b16 %v207
      %v288 = vunpack.c.l.b16 %v208
      %v289 = vunpack.c.l.b16 %v209
      %v290 = vunpack.c.l.b16 %v210
      %v291 = vunpack.c.l.b16 %v211
      %v292 = vunpack.c.l.b16 %v212
      %v293 = vunpack.c.l.b16 %v213
      %v294 = vunpack.c.l.b16 %v214
      %v295 = vunpack.c.l.b16 %v215
      %v296 = vunpack.c.l.b16 %v216
      %v297 = vunpack.c.l.b16 %v217
      %v298 = vunpack.c.l.b16 %v218
      %v299 = vunpack.c.l.b16 %v219
      %v300 = vunpack.c.l.b16 %v220
      %v301 = vunpack.c.l.b16 %v221
      %v302 = vunpack.c.l.b16 %v222
      %v303 = vunpack.c.l.b16 %v223
      %v304 = vunpack.c.l.b16 %v224
      %v305 = vunpack.c.l.b16 %v225
      %v306 = vunpack.c.l.b16 %v226
      %v307 = vunpack.c.l.b16 %v227
      %v308 = vunpack.c.l.b16 %v228
      %v309 = vunpack.c.l.b16 %v229
      %v310 = vunpack.c.l.b16 %v230
      %v311 = vunpack.c.l.b16 %v231
      %v312 = vunpack.c.l.b16 %v232
      %v313 = vunpack.c.l.b16 %v233
      %v314 = vunpack.c.l.b16 %v234
      %v315 = vpack.c.b16 %v284, %v283
      %v316 = vpack.c.b16 %v286, %v285
      %v317 = vpack.c.b16 %v288, %v287
      %v318 = vpack.c.b16 %v290, %v289
      %v319 = vpack.c.b16 %v292, %v291
      %v320 = vpack.c.b16 %v294, %v293
      %v321 = vpack.c.b16 %v296, %v295
      %v322 = vpack.c.b16 %v298, %v297
      %v323 = vpack.c.b16 %v300, %v299
      %v324 = vpack.c.b16 %v302, %v301
      %v325 = vpack.c.b16 %v304, %v303
      %v326 = vpack.c.b16 %v306, %v305
      %v327 = vpack.c.b16 %v308, %v307
      %v328 = vpack.c.b16 %v310, %v309
      %v329 = vpack.c.b16 %v312, %v311
      %v330 = vpack.c.b16 %v314, %v313
      %v363 = vunpack.c.l.b16 %v235
      %v364 = vunpack.c.l.b16 %v236
      %v365 = vunpack.c.l.b16 %v237
      %v366 = vunpack.c.l.b16 %v238
      %v367 = vunpack.c.l.b16 %v239
      %v368 = vunpack.c.l.b16 %v240
      %v369 = vunpack.c.l.b16 %v241
      %v370 = vunpack.c.l.b16 %v242
      %v371 = vunpack.c.l.b16 %v243
      %v372 = vunpack.c.l.b16 %v244
      %v373 = vunpack.c.l.b16 %v245
      %v374 = vunpack.c.l.b16 %v246
      %v375 = vunpack.c.l.b16 %v247
      %v376 = vunpack.c.l.b16 %v248
      %v377 = vunpack.c.l.b16 %v249
      %v378 = vunpack.c.l.b16 %v250
      %v379 = vpack.c.b16 %v364, %v363
      %v380 = vpack.c.b16 %v366, %v365
      %v381 = vpack.c.b16 %v368, %v367
      %v382 = vpack.c.b16 %v370, %v369
      %v383 = vpack.c.b16 %v372, %v371
      %v384 = vpack.c.b16 %v374, %v373
      %v385 = vpack.c.b16 %v376, %v375
      %v386 = vpack.c.b16 %v378, %v377
      %395 = vmatprep.subr.bf16.mxu0 0
      %396 = vmatpush1.bf16.msra.mxu0 %v386
      %397 = vmatprep.subr.bf16.mxu0 0
      %398 = vmatpush1.bf16.msra.mxu0 %v385
      %399 = vmatprep.subr.bf16.mxu0 0
      %400 = vmatpush1.bf16.msra.mxu0 %v384
      %401 = vmatprep.subr.bf16.mxu0 0
      %402 = vmatpush1.bf16.msra.mxu0 %v383
      %403 = vmatprep.subr.bf16.mxu0 0
      %404 = vmatpush1.bf16.msra.mxu0 %v382
      %405 = vmatprep.subr.bf16.mxu0 0
      %406 = vmatpush1.bf16.msra.mxu0 %v381
      %407 = vmatprep.subr.bf16.mxu0 0
      %408 = vmatpush1.bf16.msra.mxu0 %v380
      %409 = vmatprep.subr.bf16.mxu0 0
      %410 = vmatpush1.bf16.msra.mxu0 %v379
      %411 = vmatprep.subr.bf16.mxu0 0
      %412 = vmatpush2.bf16.msra.mxu0 0
      %413 = vmatprep.subr.bf16.mxu0 0
      %414 = vmatpush2.bf16.msra.mxu0 0
      %415 = vmatprep.subr.bf16.mxu0 0
      %416 = vmatpush2.bf16.msra.mxu0 0
      %417 = vmatprep.subr.bf16.mxu0 0
      %418 = vmatpush2.bf16.msra.mxu0 0
      %419 = vmatprep.subr.bf16.mxu0 0
      %420 = vmatpush2.bf16.msra.mxu0 0
      %421 = vmatprep.subr.bf16.mxu0 0
      %422 = vmatpush2.bf16.msra.mxu0 0
      %423 = vmatprep.subr.bf16.mxu0 0
      %424 = vmatpush2.bf16.msra.mxu0 0
      %425 = vmatprep.subr.bf16.mxu0 0
      %426 = vmatpush2.bf16.msra.mxu0 0
      %427 = vmatprep.mubr.bf16.mxu0 0
      %428 = vmatmul.mubr.bf16.gmra.mxu0 %v315
      %v429 = vpop.f32.mrf.mxu0
      %v430 = vadd.f32 0.0, %v429
      %v431 = vpop.f32.mrf.mxu0
      %v432 = vpop.f32.mrf.mxu0
      %v433 = vadd.f32 0.0, %v432
      %v434 = vpop.f32.mrf.mxu0
      %435 = vmatprep.mubr.bf16.mxu0 0
      %436 = vmatmul.mubr.bf16.gmra.mxu0 %v316
      %v437 = vpop.f32.mrf.mxu0
      %v438 = vadd.f32 0.0, %v437
      %v439 = vpop.f32.mrf.mxu0
      %v440 = vpop.f32.mrf.mxu0
      %v441 = vadd.f32 0.0, %v440
      %v442 = vpop.f32.mrf.mxu0
      %443 = vmatprep.mubr.bf16.mxu0 0
      %444 = vmatmul.mubr.bf16.gmra.mxu0 %v317
      %v445 = vpop.f32.mrf.mxu0
      %v446 = vadd.f32 0.0, %v445
      %v447 = vpop.f32.mrf.mxu0
      %v448 = vpop.f32.mrf.mxu0
      %v449 = vadd.f32 0.0, %v448
      %v450 = vpop.f32.mrf.mxu0
      %451 = vmatprep.mubr.bf16.mxu0 0
      %452 = vmatmul.mubr.bf16.gmra.mxu0 %v318
      %v453 = vpop.f32.mrf.mxu0
      %v454 = vadd.f32 0.0, %v453
      %v455 = vpop.f32.mrf.mxu0
      %v456 = vpop.f32.mrf.mxu0
      %v457 = vadd.f32 0.0, %v456
      %v458 = vpop.f32.mrf.mxu0
      %459 = vmatprep.mubr.bf16.mxu0 0
      %460 = vmatmul.mubr.bf16.gmra.mxu0 %v319
      %v461 = vpop.f32.mrf.mxu0
      %v462 = vadd.f32 0.0, %v461
      %v463 = vpop.f32.mrf.mxu0
      %v464 = vpop.f32.mrf.mxu0
      %v465 = vadd.f32 0.0, %v464
      %v466 = vpop.f32.mrf.mxu0
      %467 = vmatprep.mubr.bf16.mxu0 0
      %468 = vmatmul.mubr.bf16.gmra.mxu0 %v320
      %v469 = vpop.f32.mrf.mxu0
      %v470 = vadd.f32 0.0, %v469
      %v471 = vpop.f32.mrf.mxu0
      %v472 = vpop.f32.mrf.mxu0
      %v473 = vadd.f32 0.0, %v472
      %v474 = vpop.f32.mrf.mxu0
      %475 = vmatprep.mubr.bf16.mxu0 0
      %476 = vmatmul.mubr.bf16.gmra.mxu0 %v321
      %v477 = vpop.f32.mrf.mxu0
      %v478 = vadd.f32 0.0, %v477
      %v479 = vpop.f32.mrf.mxu0
      %v480 = vpop.f32.mrf.mxu0
      %v481 = vadd.f32 0.0, %v480
      %v482 = vpop.f32.mrf.mxu0
      %483 = vmatprep.mubr.bf16.mxu0 0
      %484 = vmatmul.mubr.bf16.gmra.mxu0 %v322
      %v485 = vpop.f32.mrf.mxu0
      %v486 = vadd.f32 0.0, %v485
      %v487 = vpop.f32.mrf.mxu0
      %v488 = vpop.f32.mrf.mxu0
      %v489 = vadd.f32 0.0, %v488
      %v490 = vpop.f32.mrf.mxu0
      %491 = vmatprep.mubr.bf16.mxu0 0
      %492 = vmatmul.mubr.bf16.gmra.mxu0 %v323
      %v493 = vpop.f32.mrf.mxu0
      %v494 = vadd.f32 0.0, %v493
      %v495 = vpop.f32.mrf.mxu0
      %v496 = vpop.f32.mrf.mxu0
      %v497 = vadd.f32 0.0, %v496
      %v498 = vpop.f32.mrf.mxu0
      %499 = vmatprep.mubr.bf16.mxu0 0
      %500 = vmatmul.mubr.bf16.gmra.mxu0 %v324
      %v501 = vpop.f32.mrf.mxu0
      %v502 = vadd.f32 0.0, %v501
      %v503 = vpop.f32.mrf.mxu0
      %v504 = vpop.f32.mrf.mxu0
      %v505 = vadd.f32 0.0, %v504
      %v506 = vpop.f32.mrf.mxu0
      %507 = vmatprep.mubr.bf16.mxu0 0
      %508 = vmatmul.mubr.bf16.gmra.mxu0 %v325
      %v509 = vpop.f32.mrf.mxu0
      %v510 = vadd.f32 0.0, %v509
      %v511 = vpop.f32.mrf.mxu0
      %v512 = vpop.f32.mrf.mxu0
      %v513 = vadd.f32 0.0, %v512
      %v514 = vpop.f32.mrf.mxu0
      %515 = vmatprep.mubr.bf16.mxu0 0
      %516 = vmatmul.mubr.bf16.gmra.mxu0 %v326
      %v517 = vpop.f32.mrf.mxu0
      %v518 = vadd.f32 0.0, %v517
      %v519 = vpop.f32.mrf.mxu0
      %v520 = vpop.f32.mrf.mxu0
      %v521 = vadd.f32 0.0, %v520
      %v522 = vpop.f32.mrf.mxu0
      %523 = vmatprep.mubr.bf16.mxu0 0
      %524 = vmatmul.mubr.bf16.gmra.mxu0 %v327
      %v525 = vpop.f32.mrf.mxu0
      %v526 = vadd.f32 0.0, %v525
      %v527 = vpop.f32.mrf.mxu0
      %v528 = vpop.f32.mrf.mxu0
      %v529 = vadd.f32 0.0, %v528
      %v530 = vpop.f32.mrf.mxu0
      %531 = vmatprep.mubr.bf16.mxu0 0
      %532 = vmatmul.mubr.bf16.gmra.mxu0 %v328
      %v533 = vpop.f32.mrf.mxu0
      %v534 = vadd.f32 0.0, %v533
      %v535 = vpop.f32.mrf.mxu0
      %v536 = vpop.f32.mrf.mxu0
      %v537 = vadd.f32 0.0, %v536
      %v538 = vpop.f32.mrf.mxu0
      %539 = vmatprep.mubr.bf16.mxu0 0
      %540 = vmatmul.mubr.bf16.gmra.mxu0 %v329
      %v541 = vpop.f32.mrf.mxu0
      %v542 = vadd.f32 0.0, %v541
      %v543 = vpop.f32.mrf.mxu0
      %v544 = vpop.f32.mrf.mxu0
      %v545 = vadd.f32 0.0, %v544
      %v546 = vpop.f32.mrf.mxu0
      %547 = vmatprep.mubr.bf16.mxu0 0
      %548 = vmatmul.mubr.bf16.gmra.mxu0 %v330
      %v549 = vpop.f32.mrf.mxu0
      %v550 = vadd.f32 0.0, %v549
      %v551 = vpop.f32.mrf.mxu0
      %v552 = vpop.f32.mrf.mxu0
      %v553 = vadd.f32 0.0, %v552
      %v554 = vpop.f32.mrf.mxu0
      %555 = vdwg.mxu0
      %v556 = vpack.c.bf16 %v433, %v430
      %v557 = vpack.c.bf16 %v441, %v438
      %v558 = vpack.c.bf16 %v449, %v446
      %v559 = vpack.c.bf16 %v457, %v454
      %v560 = vpack.c.bf16 %v465, %v462
      %v561 = vpack.c.bf16 %v473, %v470
      %v562 = vpack.c.bf16 %v481, %v478
      %v563 = vpack.c.bf16 %v489, %v486
      %v564 = vpack.c.bf16 %v497, %v494
      %v565 = vpack.c.bf16 %v505, %v502
      %v566 = vpack.c.bf16 %v513, %v510
      %v567 = vpack.c.bf16 %v521, %v518
      %v568 = vpack.c.bf16 %v529, %v526
      %v569 = vpack.c.bf16 %v537, %v534
      %v570 = vpack.c.bf16 %v545, %v542
      %v571 = vpack.c.bf16 %v553, %v550
      %v588 = vunpack.c.l.b16 %v556
      %v589 = vunpack.c.h.b16 %v556
      %v590 = vunpack.c.l.b16 %v557
      %v591 = vunpack.c.h.b16 %v557
      %v592 = vunpack.c.l.b16 %v558
      %v593 = vunpack.c.h.b16 %v558
      %v594 = vunpack.c.l.b16 %v559
      %v595 = vunpack.c.h.b16 %v559
      %v596 = vunpack.c.l.b16 %v560
      %v597 = vunpack.c.h.b16 %v560
      %v598 = vunpack.c.l.b16 %v561
      %v599 = vunpack.c.h.b16 %v561
      %v600 = vunpack.c.l.b16 %v562
      %v601 = vunpack.c.h.b16 %v562
      %v602 = vunpack.c.l.b16 %v563
      %v603 = vunpack.c.h.b16 %v563
      %v604 = vunpack.c.l.b16 %v564
      %v605 = vunpack.c.h.b16 %v564
      %v606 = vunpack.c.l.b16 %v565
      %v607 = vunpack.c.h.b16 %v565
      %v608 = vunpack.c.l.b16 %v566
      %v609 = vunpack.c.h.b16 %v566
      %v610 = vunpack.c.l.b16 %v567
      %v611 = vunpack.c.h.b16 %v567
      %v612 = vunpack.c.l.b16 %v568
      %v613 = vunpack.c.h.b16 %v568
      %v614 = vunpack.c.l.b16 %v569
      %v615 = vunpack.c.h.b16 %v569
      %v616 = vunpack.c.l.b16 %v570
      %v617 = vunpack.c.h.b16 %v570
      %v618 = vunpack.c.l.b16 %v571
      %v619 = vunpack.c.h.b16 %v571
      %v620 = vpack.c.b16 %v588, %v588
      %v621 = vpack.c.b16 %v589, %v589
      %v622 = vpack.c.b16 %v590, %v590
      %v623 = vpack.c.b16 %v591, %v591
      %v624 = vpack.c.b16 %v592, %v592
      %v625 = vpack.c.b16 %v593, %v593
      %v626 = vpack.c.b16 %v594, %v594
      %v627 = vpack.c.b16 %v595, %v595
      %v628 = vpack.c.b16 %v596, %v596
      %v629 = vpack.c.b16 %v597, %v597
      %v630 = vpack.c.b16 %v598, %v598
      %v631 = vpack.c.b16 %v599, %v599
      %v632 = vpack.c.b16 %v600, %v600
      %v633 = vpack.c.b16 %v601, %v601
      %v634 = vpack.c.b16 %v602, %v602
      %v635 = vpack.c.b16 %v603, %v603
      %v636 = vpack.c.b16 %v604, %v604
      %v637 = vpack.c.b16 %v605, %v605
      %v638 = vpack.c.b16 %v606, %v606
      %v639 = vpack.c.b16 %v607, %v607
      %v640 = vpack.c.b16 %v608, %v608
      %v641 = vpack.c.b16 %v609, %v609
      %v642 = vpack.c.b16 %v610, %v610
      %v643 = vpack.c.b16 %v611, %v611
      %v644 = vpack.c.b16 %v612, %v612
      %v645 = vpack.c.b16 %v613, %v613
      %v646 = vpack.c.b16 %v614, %v614
      %v647 = vpack.c.b16 %v615, %v615
      %v648 = vpack.c.b16 %v616, %v616
      %v649 = vpack.c.b16 %v617, %v617
      %v650 = vpack.c.b16 %v618, %v618
      %v651 = vpack.c.b16 %v619, %v619
      %684 = vst [vmem:[%s194] sm:$0xf] %v620
      %685 = vst [vmem:[%s194 + $0x4] sm:$0xf] %v621
      %686 = vst [vmem:[%s194 + $0x8] sm:$0xf] %v622
      %687 = vst [vmem:[%s194 + $0xc] sm:$0xf] %v623
      %688 = vst [vmem:[%s194 + $0x10] sm:$0xf] %v624
      %689 = vst [vmem:[%s194 + $0x14] sm:$0xf] %v625
      %690 = vst [vmem:[%s194 + $0x18] sm:$0xf] %v626
      %691 = vst [vmem:[%s194 + $0x1c] sm:$0xf] %v627
      %692 = vst [vmem:[%s194 + $0x20] sm:$0xf] %v628
      %693 = vst [vmem:[%s194 + $0x24] sm:$0xf] %v629
      %694 = vst [vmem:[%s194 + $0x28] sm:$0xf] %v630
      %695 = vst [vmem:[%s194 + $0x2c] sm:$0xf] %v631
      %696 = vst [vmem:[%s194 + $0x30] sm:$0xf] %v632
      %697 = vst [vmem:[%s194 + $0x34] sm:$0xf] %v633
      %698 = vst [vmem:[%s194 + $0x38] sm:$0xf] %v634
      %699 = vst [vmem:[%s194 + $0x3c] sm:$0xf] %v635
      %700 = vst [vmem:[%s194 + $0x40] sm:$0xf] %v636
      %701 = vst [vmem:[%s194 + $0x44] sm:$0xf] %v637
      %702 = vst [vmem:[%s194 + $0x48] sm:$0xf] %v638
      %703 = vst [vmem:[%s194 + $0x4c] sm:$0xf] %v639
      %704 = vst [vmem:[%s194 + $0x50] sm:$0xf] %v640
      %705 = vst [vmem:[%s194 + $0x54] sm:$0xf] %v641
      %706 = vst [vmem:[%s194 + $0x58] sm:$0xf] %v642
      %707 = vst [vmem:[%s194 + $0x5c] sm:$0xf] %v643
      %708 = vst [vmem:[%s194 + $0x60] sm:$0xf] %v644
      %709 = vst [vmem:[%s194 + $0x64] sm:$0xf] %v645
      %710 = vst [vmem:[%s194 + $0x68] sm:$0xf] %v646
      %711 = vst [vmem:[%s194 + $0x6c] sm:$0xf] %v647
      %712 = vst [vmem:[%s194 + $0x70] sm:$0xf] %v648
      %713 = vst [vmem:[%s194 + $0x74] sm:$0xf] %v649
      %714 = vst [vmem:[%s194 + $0x78] sm:$0xf] %v650
      %715 = vst [vmem:[%s194 + $0x7c] sm:$0xf] %v651
      %v716 = vld [vmem:[%s3] sm:$0x1]
      %v717 = vadd.f32 %v430, %v433
      %v718 = vadd.f32 %v717, %v438
      %v719 = vadd.f32 %v718, %v441
      %v720 = vadd.f32 %v719, %v446
      %v721 = vadd.f32 %v720, %v449
      %v722 = vadd.f32 %v721, %v454
      %v723 = vadd.f32 %v722, %v457
      %v724 = vadd.f32 %v723, %v462
      %v725 = vadd.f32 %v724, %v465
      %v726 = vadd.f32 %v725, %v470
      %v727 = vadd.f32 %v726, %v473
      %v728 = vadd.f32 %v727, %v478
      %v729 = vadd.f32 %v728, %v481
      %v730 = vadd.f32 %v729, %v486
      %v731 = vadd.f32 %v730, %v489
      %v732 = vadd.f32 %v731, %v494
      %v733 = vadd.f32 %v732, %v497
      %v734 = vadd.f32 %v733, %v502
      %v735 = vadd.f32 %v734, %v505
      %v736 = vadd.f32 %v735, %v510
      %v737 = vadd.f32 %v736, %v513
      %v738 = vadd.f32 %v737, %v518
      %v739 = vadd.f32 %v738, %v521
      %v740 = vadd.f32 %v739, %v526
      %v741 = vadd.f32 %v740, %v529
      %v742 = vadd.f32 %v741, %v534
      %v743 = vadd.f32 %v742, %v537
      %v744 = vadd.f32 %v743, %v542
      %v745 = vadd.f32 %v744, %v545
      %v746 = vadd.f32 %v745, %v550
      %v747 = vadd.f32 %v746, %v553
      %v748 = vrot.slane %v747, 4
      %v749 = vadd.f32 %v747, %v748
      %v750 = vrot.slane %v749, 2
      %v751 = vadd.f32 %v749, %v750
      %v752 = vrot.slane %v751, 1
      %v753 = vadd.f32 %v751, %v752
      %v754 = vadd.f32 %v716, %v753
      %755 = vst [vmem:[%s3] sm:$0x1] %v754
      %v756 = vld [vmem:[%s4] sm:$0x1]
      %v757 = vmul.f32 %v430, %v430
      %v758 = vmul.f32 %v433, %v433
      %v759 = vmul.f32 %v438, %v438
      %v760 = vmul.f32 %v441, %v441
      %v761 = vmul.f32 %v446, %v446
      %v762 = vmul.f32 %v449, %v449
      %v763 = vmul.f32 %v454, %v454
      %v764 = vmul.f32 %v457, %v457
      %v765 = vmul.f32 %v462, %v462
      %v766 = vmul.f32 %v465, %v465
      %v767 = vmul.f32 %v470, %v470
      %v768 = vmul.f32 %v473, %v473
      %v769 = vmul.f32 %v478, %v478
      %v770 = vmul.f32 %v481, %v481
      %v771 = vmul.f32 %v486, %v486
      %v772 = vmul.f32 %v489, %v489
      %v773 = vmul.f32 %v494, %v494
      %v774 = vmul.f32 %v497, %v497
      %v775 = vmul.f32 %v502, %v502
      %v776 = vmul.f32 %v505, %v505
      %v777 = vmul.f32 %v510, %v510
      %v778 = vmul.f32 %v513, %v513
      %v779 = vmul.f32 %v518, %v518
      %v780 = vmul.f32 %v521, %v521
      %v781 = vmul.f32 %v526, %v526
      %v782 = vmul.f32 %v529, %v529
      %v783 = vmul.f32 %v534, %v534
      %v784 = vmul.f32 %v537, %v537
      %v785 = vmul.f32 %v542, %v542
      %v786 = vmul.f32 %v545, %v545
      %v787 = vmul.f32 %v550, %v550
      %v788 = vmul.f32 %v553, %v553
      %v789 = vadd.f32 %v757, %v758
      %v790 = vadd.f32 %v789, %v759
      %v791 = vadd.f32 %v790, %v760
      %v792 = vadd.f32 %v791, %v761
      %v793 = vadd.f32 %v792, %v762
      %v794 = vadd.f32 %v793, %v763
      %v795 = vadd.f32 %v794, %v764
      %v796 = vadd.f32 %v795, %v765
      %v797 = vadd.f32 %v796, %v766
      %v798 = vadd.f32 %v797, %v767
      %v799 = vadd.f32 %v798, %v768
      %v800 = vadd.f32 %v799, %v769
      %v801 = vadd.f32 %v800, %v770
      %v802 = vadd.f32 %v801, %v771
      %v803 = vadd.f32 %v802, %v772
      %v804 = vadd.f32 %v803, %v773
      %v805 = vadd.f32 %v804, %v774
      %v806 = vadd.f32 %v805, %v775
      %v807 = vadd.f32 %v806, %v776
      %v808 = vadd.f32 %v807, %v777
      %v809 = vadd.f32 %v808, %v778
      %v810 = vadd.f32 %v809, %v779
      %v811 = vadd.f32 %v810, %v780
      %v812 = vadd.f32 %v811, %v781
      %v813 = vadd.f32 %v812, %v782
      %v814 = vadd.f32 %v813, %v783
      %v815 = vadd.f32 %v814, %v784
      %v816 = vadd.f32 %v815, %v785
      %v817 = vadd.f32 %v816, %v786
      %v818 = vadd.f32 %v817, %v787
      %v819 = vadd.f32 %v818, %v788
      %v820 = vrot.slane %v819, 4
      %v821 = vadd.f32 %v819, %v820
      %v822 = vrot.slane %v821, 2
      %v823 = vadd.f32 %v821, %v822
      %v824 = vrot.slane %v823, 1
      %v825 = vadd.f32 %v823, %v824
      %v826 = vadd.f32 %v756, %v825
      %827 = vst [vmem:[%s4] sm:$0x1] %v826
      %s828 = smul.u32 32, %s16
      %p829 = scmp.lt.s32.totalorder %s828, 63
      %s830 = scalar_select %p829, %s828, 63
      %s831 = smul.addr %s830, 4
      %s832 = scalar_lea.vmem %s2, %s831
      // Predicated region
      $region33: #{_residual_forward_impl.4} parent=27 // pred_check
        %p833 = pneg %p81
      $region34: #{_residual_forward_impl.4} parent=27 // pred_check_branch
        %835 = sbr.rel (%p833) target = $region36
      $region35: #{_residual_forward_impl.4} parent=27 // pred_region
        %s836 = smul.u32 32, %s16
      $region36: #{_residual_forward_impl.4} parent=27 // pred_fallthru
        _
      // Predicated region
      $region37: #{_residual_forward_impl.4} parent=27 // pred_check
        %p837 = pneg %p102
      $region38: #{_residual_forward_impl.4} parent=27 // pred_check_branch
        %839 = sbr.rel (%p837) target = $region40
      $region39: #{_residual_forward_impl.4} parent=27 // pred_region
        _
      $region40: #{_residual_forward_impl.4} parent=27 // pred_fallthru
        _
      // Predicated region
      $region41: #{_residual_forward_impl.4} parent=27 // pred_check
        %p840 = pneg %p123
      $region42: #{_residual_forward_impl.4} parent=27 // pred_check_branch
        %842 = sbr.rel (%p840) target = $region44
      $region43: #{_residual_forward_impl.4} parent=27 // pred_region
        _
      $region44: #{_residual_forward_impl.4} parent=27 // pred_fallthru
        _
      // Predicated region
      $region45: #{_residual_forward_impl.4} parent=27 // pred_check
        %p843 = pneg %p102
      $region46: #{_residual_forward_impl.4} parent=27 // pred_check_branch
        %845 = sbr.rel (%p843) target = $region48
      $region47: #{_residual_forward_impl.4} parent=27 // pred_region
        _
      $region48: #{_residual_forward_impl.4} parent=27 // pred_fallthru
        _
      // Predicated region
      $region49: #{_residual_forward_impl.4} parent=27 // pred_check
        %p846 = pneg %p123
      $region50: #{_residual_forward_impl.4} parent=27 // pred_check_branch
        %848 = sbr.rel (%p846) target = $region52
      $region51: #{_residual_forward_impl.4} parent=27 // pred_region
        _
      $region52: #{_residual_forward_impl.4} parent=27 // pred_fallthru
        _
    $region28: #{_residual_forward_impl.4} parent=5 // pred_fallthru
      _
    %p849 = scmp.le.s32.totalorder 2, %s11
    // Predicated region
    $region53: #{_residual_forward_impl.4} parent=5 // pred_check
      %p850 = pneg %p849
    $region54: #{_residual_forward_impl.4} parent=5 // pred_check_branch
      %852 = sbr.rel (%p850) target = $region56
    $region55: #{_residual_forward_impl.4} parent=5 // pred_region
      %s853 = ssub.s32 %s11, 2
      // Predicated region
      $region57: #{_residual_forward_impl.4} parent=55 // pred_check
        %p854 = pneg %p87
      $region58: #{_residual_forward_impl.4} parent=55 // pred_check_branch
        %856 = sbr.rel (%p854) target = $region60
      $region59: #{_residual_forward_impl.4} parent=55 // pred_region
        %s857 = smul.u32 32, %s17
        %p858 = scmp.lt.s32.totalorder %s857, 63
        %s859 = scalar_select %p858, %s857, 63
        %s860 = smul.addr %s859, 4
        %s861 = scalar_lea.vmem %s2, %s860
      $region60: #{_residual_forward_impl.4} parent=55 // pred_fallthru
        _
    $region56: #{_residual_forward_impl.4} parent=5 // pred_fallthru
      _
  $region6: #{_residual_forward_impl.4} parent=0 // loop_footer
    %s15 = sadd.s32 1, %s11
  $region7: #{_residual_forward_impl.4} parent=0 // loop_footer_branch
    %10 = sbr.rel target = $region3
  $region8: #{_residual_forward_impl.4} parent=0 // loop_exit
    _

// kernel: _residual_forward_impl.7
$region0: #{_residual_forward_impl.7}
  #allocation0 [shape = 'u32[]', space=smem, size = 0x4, offset = 0x4, fixed_abs, tag = 'smem constant byte address 0x4 - core index']
  #allocation1 [shape = 'u32[144,128]{1,0:T(1,128)}', space=vmem, size = 0x12000, scoped, tag = 'internal scratch']
  %s0 = inlined_call_operand.vmem [shape: bf16[512,128], index: 0, kind: input, shape index: {}]
  %s1 = inlined_call_operand.vmem [shape: f32[1,128], index: 1, kind: input, shape index: {}]
  %s2 = inlined_call_operand.vmem [shape: f32[1,128], index: 2, kind: input, shape index: {}]
  %s3 = inlined_call_operand.vmem [shape: f32[1,128], index: 3, kind: input, shape index: {}]
  %s4 = inlined_call_operand.vmem [shape: f32[1,128], index: 4, kind: input, shape index: {}]
  %s5 = inlined_call_operand.vmem [shape: f32[512,128], index: 5, kind: input, shape index: {}]
  %s6 = inlined_call_operand.vmem [shape: f32[512,128], index: 6, kind: output, shape index: {}]
  %s7 = sld [smem:[#allocation0]]
  $region57: #{_residual_forward_impl.7} parent=0
    _
  %s9 = ssub.s32 1, %s7
  %s10 = scalar_select 0, %s9, %s7
  loop: start=0, step=1, limit=4
  $region2: #{_residual_forward_impl.7} parent=0 // loop_pre_header
    _
  $region3: #{_residual_forward_impl.7} parent=0 // loop_header
    %s12 = sphi 0, %s16
    %p13 = scmp.ge.s32.totalorder %s12, 4
    %s22 = sphi 0, %s24
    %s25 = sphi 0, %s22
    %s26 = sphi 0, %s25
    %s42 = sphi 0, %s26
    %s46 = sphi 0, %s46
    %s48 = sphi 0, %s46
    %s49 = sphi 0, %s48
    %s63 = sphi 0, %s49
    %s67 = sphi 0, %s67
    %s69 = sphi 0, %s67
    %s70 = sphi 0, %s69
    %s84 = sphi 0, %s70
    %s88 = sphi 0, %s88
    %s90 = sphi 0, %s88
    %s91 = sphi 0, %s90
    %s105 = sphi 0, %s91
    %s109 = sphi 0, %s109
    %s111 = sphi 0, %s109
    %s112 = sphi 0, %s111
    %s126 = sphi 0, %s112
    %s132 = sphi 0, %s134
    %s135 = sphi 0, %s132
    %s136 = sphi 0, %s135
    %s152 = sphi 0, %s136
    %s158 = sphi 0, %s160
    %s161 = sphi 0, %s158
    %s162 = sphi 0, %s161
    %s178 = sphi 0, %s162
  $region4: #{_residual_forward_impl.7} parent=0 // loop_header_branch
    %15 = sbr.rel (%p13) target = $region8
  $region5: #{_residual_forward_impl.7} parent=0 // loop_body
    %s17 = ssub.s32 %s12, 1
    %s18 = ssub.s32 %s12, 2
    %s19 = sadd.s32 %s12, 1
    %s20 = ssub.s32 %s12, %s19
    %p21 = scmp.eq.s32.totalorder %s20, 0
    %s23 = sadd.s32 %s22, 1
    %s24 = scalar_select %p21, %s22, %s23
    %p27 = pneg %p21
    %p28 = scmp.eq.s32.totalorder %s12, 1
    %p29 = por %p27, %p28
    %p30 = scmp.ne.s32.totalorder %s22, %s25
    %p31 = scmp.eq.s32.totalorder %s12, 0
    %p32 = por %p30, %p31
    %p33 = scmp.ne.s32.totalorder %s22, %s25
    %p34 = scmp.eq.s32.totalorder %s17, 1
    %p35 = por %p33, %p34
    %p36 = scmp.ne.s32.totalorder %s25, %s26
    %p37 = scmp.eq.s32.totalorder %s17, 0
    %p38 = por %p36, %p37
    %p39 = scmp.ne.s32.totalorder %s25, %s26
    %p40 = scmp.eq.s32.totalorder %s18, 1
    %p41 = por %p39, %p40
    %p43 = scmp.ne.s32.totalorder %s26, %s42
    %p44 = scmp.eq.s32.totalorder %s18, 0
    %p45 = por %p43, %p44
    %s47 = sadd.s32 %s46, 1
    %p50 = scmp.eq.s32.totalorder %s12, 1
    %p51 = scmp.ne.s32.totalorder %s46, %s48
    %p52 = scmp.eq.s32.totalorder %s12, 0
    %p53 = por %p51, %p52
    %p54 = scmp.ne.s32.totalorder %s46, %s48
    %p55 = scmp.eq.s32.totalorder %s17, 1
    %p56 = por %p54, %p55
    %p57 = scmp.ne.s32.totalorder %s48, %s49
    %p58 = scmp.eq.s32.totalorder %s17, 0
    %p59 = por %p57, %p58
    %p60 = scmp.ne.s32.totalorder %s48, %s49
    %p61 = scmp.eq.s32.totalorder %s18, 1
    %p62 = por %p60, %p61
    %p64 = scmp.ne.s32.totalorder %s49, %s63
    %p65 = scmp.eq.s32.totalorder %s18, 0
    %p66 = por %p64, %p65
    %s68 = sadd.s32 %s67, 1
    %p71 = scmp.eq.s32.totalorder %s12, 1
    %p72 = scmp.ne.s32.totalorder %s67, %s69
    %p73 = scmp.eq.s32.totalorder %s12, 0
    %p74 = por %p72, %p73
    %p75 = scmp.ne.s32.totalorder %s67, %s69
    %p76 = scmp.eq.s32.totalorder %s17, 1
    %p77 = por %p75, %p76
    %p78 = scmp.ne.s32.totalorder %s69, %s70
    %p79 = scmp.eq.s32.totalorder %s17, 0
    %p80 = por %p78, %p79
    %p81 = scmp.ne.s32.totalorder %s69, %s70
    %p82 = scmp.eq.s32.totalorder %s18, 1
    %p83 = por %p81, %p82
    %p85 = scmp.ne.s32.totalorder %s70, %s84
    %p86 = scmp.eq.s32.totalorder %s18, 0
    %p87 = por %p85, %p86
    %s89 = sadd.s32 %s88, 1
    %p92 = scmp.eq.s32.totalorder %s12, 1
    %p93 = scmp.ne.s32.totalorder %s88, %s90
    %p94 = scmp.eq.s32.totalorder %s12, 0
    %p95 = por %p93, %p94
    %p96 = scmp.ne.s32.totalorder %s88, %s90
    %p97 = scmp.eq.s32.totalorder %s17, 1
    %p98 = por %p96, %p97
    %p99 = scmp.ne.s32.totalorder %s90, %s91
    %p100 = scmp.eq.s32.totalorder %s17, 0
    %p101 = por %p99, %p100
    %p102 = scmp.ne.s32.totalorder %s90, %s91
    %p103 = scmp.eq.s32.totalorder %s18, 1
    %p104 = por %p102, %p103
    %p106 = scmp.ne.s32.totalorder %s91, %s105
    %p107 = scmp.eq.s32.totalorder %s18, 0
    %p108 = por %p106, %p107
    %s110 = sadd.s32 %s109, 1
    %p113 = scmp.eq.s32.totalorder %s12, 1
    %p114 = scmp.ne.s32.totalorder %s109, %s111
    %p115 = scmp.eq.s32.totalorder %s12, 0
    %p116 = por %p114, %p115
    %p117 = scmp.ne.s32.totalorder %s109, %s111
    %p118 = scmp.eq.s32.totalorder %s17, 1
    %p119 = por %p117, %p118
    %p120 = scmp.ne.s32.totalorder %s111, %s112
    %p121 = scmp.eq.s32.totalorder %s17, 0
    %p122 = por %p120, %p121
    %p123 = scmp.ne.s32.totalorder %s111, %s112
    %p124 = scmp.eq.s32.totalorder %s18, 1
    %p125 = por %p123, %p124
    %p127 = scmp.ne.s32.totalorder %s112, %s126
    %p128 = scmp.eq.s32.totalorder %s18, 0
    %p129 = por %p127, %p128
    %s130 = ssub.s32 %s12, %s19
    %p131 = scmp.eq.s32.totalorder %s130, 0
    %s133 = sadd.s32 %s132, 1
    %s134 = scalar_select %p131, %s132, %s133
    %p137 = pneg %p131
    %p138 = scmp.eq.s32.totalorder %s12, 1
    %p139 = por %p137, %p138
    %p140 = scmp.ne.s32.totalorder %s132, %s135
    %p141 = scmp.eq.s32.totalorder %s12, 0
    %p142 = por %p140, %p141
    %p143 = scmp.ne.s32.totalorder %s132, %s135
    %p144 = scmp.eq.s32.totalorder %s17, 1
    %p145 = por %p143, %p144
    %p146 = scmp.ne.s32.totalorder %s135, %s136
    %p147 = scmp.eq.s32.totalorder %s17, 0
    %p148 = por %p146, %p147
    %p149 = scmp.ne.s32.totalorder %s135, %s136
    %p150 = scmp.eq.s32.totalorder %s18, 1
    %p151 = por %p149, %p150
    %p153 = scmp.ne.s32.totalorder %s136, %s152
    %p154 = scmp.eq.s32.totalorder %s18, 0
    %p155 = por %p153, %p154
    %s156 = ssub.s32 %s12, %s19
    %p157 = scmp.eq.s32.totalorder %s156, 0
    %s159 = sadd.s32 %s158, 1
    %s160 = scalar_select %p157, %s158, %s159
    %p163 = pneg %p157
    %p164 = scmp.eq.s32.totalorder %s12, 1
    %p165 = por %p163, %p164
    %p166 = scmp.ne.s32.totalorder %s158, %s161
    %p167 = scmp.eq.s32.totalorder %s12, 0
    %p168 = por %p166, %p167
    %p169 = scmp.ne.s32.totalorder %s158, %s161
    %p170 = scmp.eq.s32.totalorder %s17, 1
    %p171 = por %p169, %p170
    %p172 = scmp.ne.s32.totalorder %s161, %s162
    %p173 = scmp.eq.s32.totalorder %s17, 0
    %p174 = por %p172, %p173
    %p175 = scmp.ne.s32.totalorder %s161, %s162
    %p176 = scmp.eq.s32.totalorder %s18, 1
    %p177 = por %p175, %p176
    %p179 = scmp.ne.s32.totalorder %s162, %s178
    %p180 = scmp.eq.s32.totalorder %s18, 0
    %p181 = por %p179, %p180
    %p182 = scmp.le.s32.totalorder 1, %s12
    %p183 = scmp.lt.s32.totalorder %s12, 3
    %p184 = pnand %p182, %p183
    %p185 = pneg %p184
    // Predicated region
    $region9: #{_residual_forward_impl.7} parent=5 // pred_check
      _
    $region10: #{_residual_forward_impl.7} parent=5 // pred_check_branch
      %187 = sbr.rel (%p184) target = $region12
    $region11: #{_residual_forward_impl.7} parent=5 // pred_region
      %s188 = ssub.s32 %s12, 1
      // Predicated region
      $region13: #{_residual_forward_impl.7} parent=11 // pred_check
        %p189 = pneg %p59
      $region14: #{_residual_forward_impl.7} parent=11 // pred_check_branch
        %191 = sbr.rel (%p189) target = $region16
      $region15: #{_residual_forward_impl.7} parent=11 // pred_region
        _
      $region16: #{_residual_forward_impl.7} parent=11 // pred_fallthru
        _
      // Predicated region
      $region17: #{_residual_forward_impl.7} parent=11 // pred_check
        %p192 = pneg %p80
      $region18: #{_residual_forward_impl.7} parent=11 // pred_check_branch
        %194 = sbr.rel (%p192) target = $region20
      $region19: #{_residual_forward_impl.7} parent=11 // pred_region
        _
      $region20: #{_residual_forward_impl.7} parent=11 // pred_fallthru
        _
      // Predicated region
      $region21: #{_residual_forward_impl.7} parent=11 // pred_check
        %p195 = pneg %p101
      $region22: #{_residual_forward_impl.7} parent=11 // pred_check_branch
        %197 = sbr.rel (%p195) target = $region24
      $region23: #{_residual_forward_impl.7} parent=11 // pred_region
        _
      $region24: #{_residual_forward_impl.7} parent=11 // pred_fallthru
        _
      // Predicated region
      $region25: #{_residual_forward_impl.7} parent=11 // pred_check
        %p198 = pneg %p122
      $region26: #{_residual_forward_impl.7} parent=11 // pred_check_branch
        %200 = sbr.rel (%p198) target = $region28
      $region27: #{_residual_forward_impl.7} parent=11 // pred_region
        _
      $region28: #{_residual_forward_impl.7} parent=11 // pred_fallthru
        _
    $region12: #{_residual_forward_impl.7} parent=5 // pred_fallthru
      _
    %p201 = scmp.lt.s32.totalorder %s12, 2
    // Predicated region
    $region29: #{_residual_forward_impl.7} parent=5 // pred_check
      %p202 = pneg %p201
    $region30: #{_residual_forward_impl.7} parent=5 // pred_check_branch
      %204 = sbr.rel (%p202) target = $region32
    $region31: #{_residual_forward_impl.7} parent=5 // pred_region
      // Predicated region
      $region33: #{_residual_forward_impl.7} parent=31 // pred_check
        %p205 = pneg %p32
      $region34: #{_residual_forward_impl.7} parent=31 // pred_check_branch
        %207 = sbr.rel (%p205) target = $region36
      $region35: #{_residual_forward_impl.7} parent=31 // pred_region
        %s208 = smul.u32 32, %s12
        %p209 = scmp.lt.s32.totalorder %s208, 63
        %s210 = scalar_select %p209, %s208, 63
        %s211 = smul.addr %s210, 4
        %s212 = scalar_lea.vmem %s0, %s211
        %s213 = smul.u32 32, %s12
      $region36: #{_residual_forward_impl.7} parent=31 // pred_fallthru
        _
      // Predicated region
      $region37: #{_residual_forward_impl.7} parent=31 // pred_check
        %p214 = pneg %p142
      $region38: #{_residual_forward_impl.7} parent=31 // pred_check_branch
        %216 = sbr.rel (%p214) target = $region40
      $region39: #{_residual_forward_impl.7} parent=31 // pred_region
        %s217 = smul.u32 32, %s12
        %p218 = scmp.lt.s32.totalorder %s217, 63
        %s219 = scalar_select %p218, %s217, 63
        %s220 = smul.addr %s219, 8
        %s221 = scalar_lea.vmem %s5, %s220
        %s222 = smul.u32 32, %s12
      $region40: #{_residual_forward_impl.7} parent=31 // pred_fallthru
        _
    $region32: #{_residual_forward_impl.7} parent=5 // pred_fallthru
      _
    %p223 = scmp.le.s32.totalorder 1, %s12
    %p224 = scmp.lt.s32.totalorder %s12, 3
    %p225 = pnand %p223, %p224
    %p226 = pneg %p225
    // Predicated region
    $region41: #{_residual_forward_impl.7} parent=5 // pred_check
      _
    $region42: #{_residual_forward_impl.7} parent=5 // pred_check_branch
      %228 = sbr.rel (%p225) target = $region44
    $region43: #{_residual_forward_impl.7} parent=5 // pred_region
      %s229 = ssub.s32 %s12, 1
      %s230 = smul.u32 32, %s17
      %p231 = scmp.lt.s32.totalorder %s230, 63
      %s232 = scalar_select %p231, %s230, 63
      %s233 = smul.addr %s232, 4
      %s234 = scalar_lea.vmem %s0, %s233
      %p235 = pneg %p38
      %p236 = pneg %p35
      %p237 = pneg %p59
      %p238 = pneg %p56
      %p239 = pneg %p80
      %p240 = pneg %p77
      %p241 = pneg %p101
      %p242 = pneg %p98
      %p243 = pneg %p122
      %p244 = pneg %p119
      %s245 = smul.u32 32, %s17
      %p246 = scmp.lt.s32.totalorder %s245, 63
      %s247 = scalar_select %p246, %s245, 63
      %s248 = smul.addr %s247, 8
      %s249 = scalar_lea.vmem %s5, %s248
      %p250 = pneg %p148
      %p251 = pneg %p145
      %p252 = pneg %p174
      %p253 = pneg %p171
      %s254 = smul.u32 32, %s17
      %p255 = scmp.lt.s32.totalorder %s254, 63
      %s256 = scalar_select %p255, %s254, 63
      %s257 = smul.addr %s256, 8
      %s258 = scalar_lea.vmem %s6, %s257
      %s259 = smul.u32 32, %s17
      %p260 = scmp.lt.s32.totalorder %s259, 63
      %s261 = scalar_select %p260, %s259, 63
      %s262 = smul.addr %s261, 4
      %s263 = scalar_lea.vmem %s0, %s262
      %s264 = smul.u32 32, %s17
      %s265 = smul.u32 32, %s17
      %p266 = scmp.lt.s32.totalorder %s265, 63
      %s267 = scalar_select %p266, %s265, 63
      %s268 = smul.addr %s267, 8
      %s269 = scalar_lea.vmem %s5, %s268
      %s270 = smul.u32 32, %s17
      %s271 = smul.u32 32, %s17
      %p272 = scmp.lt.s32.totalorder %s271, 63
      %s273 = scalar_select %p272, %s271, 63
      %s274 = smul.addr %s273, 8
      %s275 = scalar_lea.vmem %s6, %s274
      %s276 = smul.u32 32, %s17
      %v277 = vld [vmem:[%s269] sm:$0xff]
      %v278 = vld [vmem:[%s269 + $0x8] sm:$0xff]
      %v279 = vld [vmem:[%s269 + $0x10] sm:$0xff]
      %v280 = vld [vmem:[%s269 + $0x18] sm:$0xff]
      %v281 = vld [vmem:[%s269 + $0x20] sm:$0xff]
      %v282 = vld [vmem:[%s269 + $0x28] sm:$0xff]
      %v283 = vld [vmem:[%s269 + $0x30] sm:$0xff]
      %v284 = vld [vmem:[%s269 + $0x38] sm:$0xff]
      %v285 = vld [vmem:[%s269 + $0x40] sm:$0xff]
      %v286 = vld [vmem:[%s269 + $0x48] sm:$0xff]
      %v287 = vld [vmem:[%s269 + $0x50] sm:$0xff]
      %v288 = vld [vmem:[%s269 + $0x58] sm:$0xff]
      %v289 = vld [vmem:[%s269 + $0x60] sm:$0xff]
      %v290 = vld [vmem:[%s269 + $0x68] sm:$0xff]
      %v291 = vld [vmem:[%s269 + $0x70] sm:$0xff]
      %v292 = vld [vmem:[%s269 + $0x78] sm:$0xff]
      %v293 = vld [vmem:[%s269 + $0x80] sm:$0xff]
      %v294 = vld [vmem:[%s269 + $0x88] sm:$0xff]
      %v295 = vld [vmem:[%s269 + $0x90] sm:$0xff]
      %v296 = vld [vmem:[%s269 + $0x98] sm:$0xff]
      %v297 = vld [vmem:[%s269 + $0xa0] sm:$0xff]
      %v298 = vld [vmem:[%s269 + $0xa8] sm:$0xff]
      %v299 = vld [vmem:[%s269 + $0xb0] sm:$0xff]
      %v300 = vld [vmem:[%s269 + $0xb8] sm:$0xff]
      %v301 = vld [vmem:[%s269 + $0xc0] sm:$0xff]
      %v302 = vld [vmem:[%s269 + $0xc8] sm:$0xff]
      %v303 = vld [vmem:[%s269 + $0xd0] sm:$0xff]
      %v304 = vld [vmem:[%s269 + $0xd8] sm:$0xff]
      %v305 = vld [vmem:[%s269 + $0xe0] sm:$0xff]
      %v306 = vld [vmem:[%s269 + $0xe8] sm:$0xff]
      %v307 = vld [vmem:[%s269 + $0xf0] sm:$0xff]
      %v308 = vld [vmem:[%s269 + $0xf8] sm:$0xff]
      %v309 = vld [vmem:[%s1] sm:$0x1]
      %v310 = vld [vmem:[%s2] sm:$0x1]
      %v311 = vld [vmem:[%s3] sm:$0x1]
      %v312 = vld [vmem:[%s4] sm:$0x1]
      %v313 = vmul.f32 %v309, 0.001953125
      %v314 = vmul.f32 %v310, 0.001953125
      %v315 = vmul.f32 %v313, %v313
      %v316 = vsub.f32 %v314, %v315
      %v317 = vmax.f32 %v316, 0.0
      %v318 = vadd.f32 %v317, 1e-05
      %v319 = vrsqrt.pop %v318
      %v320 = vmul.f32 %v311, %v319
      %v321 = vmul.f32 %v313, %v320
      %v322 = vsub.f32 %v312, %v321
      %v323 = vld [vmem:[%s263] sm:$0xf]
      %v324 = vld [vmem:[%s263 + $0x4] sm:$0xf]
      %v325 = vld [vmem:[%s263 + $0x8] sm:$0xf]
      %v326 = vld [vmem:[%s263 + $0xc] sm:$0xf]
      %v327 = vld [vmem:[%s263 + $0x10] sm:$0xf]
      %v328 = vld [vmem:[%s263 + $0x14] sm:$0xf]
      %v329 = vld [vmem:[%s263 + $0x18] sm:$0xf]
      %v330 = vld [vmem:[%s263 + $0x1c] sm:$0xf]
      %v331 = vld [vmem:[%s263 + $0x20] sm:$0xf]
      %v332 = vld [vmem:[%s263 + $0x24] sm:$0xf]
      %v333 = vld [vmem:[%s263 + $0x28] sm:$0xf]
      %v334 = vld [vmem:[%s263 + $0x2c] sm:$0xf]
      %v335 = vld [vmem:[%s263 + $0x30] sm:$0xf]
      %v336 = vld [vmem:[%s263 + $0x34] sm:$0xf]
      %v337 = vld [vmem:[%s263 + $0x38] sm:$0xf]
      %v338 = vld [vmem:[%s263 + $0x3c] sm:$0xf]
      %v339 = vld [vmem:[%s263 + $0x40] sm:$0xf]
      %v340 = vld [vmem:[%s263 + $0x44] sm:$0xf]
      %v341 = vld [vmem:[%s263 + $0x48] sm:$0xf]
      %v342 = vld [vmem:[%s263 + $0x4c] sm:$0xf]
      %v343 = vld [vmem:[%s263 + $0x50] sm:$0xf]
      %v344 = vld [vmem:[%s263 + $0x54] sm:$0xf]
      %v345 = vld [vmem:[%s263 + $0x58] sm:$0xf]
      %v346 = vld [vmem:[%s263 + $0x5c] sm:$0xf]
      %v347 = vld [vmem:[%s263 + $0x60] sm:$0xf]
      %v348 = vld [vmem:[%s263 + $0x64] sm:$0xf]
      %v349 = vld [vmem:[%s263 + $0x68] sm:$0xf]
      %v350 = vld [vmem:[%s263 + $0x6c] sm:$0xf]
      %v351 = vld [vmem:[%s263 + $0x70] sm:$0xf]
      %v352 = vld [vmem:[%s263 + $0x74] sm:$0xf]
      %v353 = vld [vmem:[%s263 + $0x78] sm:$0xf]
      %v354 = vld [vmem:[%s263 + $0x7c] sm:$0xf]
      %v355 = vunpack.c.l.bf16 %v323
      %v356 = vunpack.c.l.bf16 %v324
      %v357 = vunpack.c.l.bf16 %v325
      %v358 = vunpack.c.l.bf16 %v326
      %v359 = vunpack.c.l.bf16 %v327
      %v360 = vunpack.c.l.bf16 %v328
      %v361 = vunpack.c.l.bf16 %v329
      %v362 = vunpack.c.l.bf16 %v330
      %v363 = vunpack.c.l.bf16 %v331
      %v364 = vunpack.c.l.bf16 %v332
      %v365 = vunpack.c.l.bf16 %v333
      %v366 = vunpack.c.l.bf16 %v334
      %v367 = vunpack.c.l.bf16 %v335
      %v368 = vunpack.c.l.bf16 %v336
      %v369 = vunpack.c.l.bf16 %v337
      %v370 = vunpack.c.l.bf16 %v338
      %v371 = vunpack.c.l.bf16 %v339
      %v372 = vunpack.c.l.bf16 %v340
      %v373 = vunpack.c.l.bf16 %v341
      %v374 = vunpack.c.l.bf16 %v342
      %v375 = vunpack.c.l.bf16 %v343
      %v376 = vunpack.c.l.bf16 %v344
      %v377 = vunpack.c.l.bf16 %v345
      %v378 = vunpack.c.l.bf16 %v346
      %v379 = vunpack.c.l.bf16 %v347
      %v380 = vunpack.c.l.bf16 %v348
      %v381 = vunpack.c.l.bf16 %v349
      %v382 = vunpack.c.l.bf16 %v350
      %v383 = vunpack.c.l.bf16 %v351
      %v384 = vunpack.c.l.bf16 %v352
      %v385 = vunpack.c.l.bf16 %v353
      %v386 = vunpack.c.l.bf16 %v354
      %v388 = vlaneseq
      %v389 = vshrl.u32 %v388, 7
      %v390 = vsub.s32 0, %v389
      %v391 = vrot.slane %v320, %v390
      %v393 = vmul.f32 %v355, %v391
      %v394 = vmul.f32 %v356, %v391
      %v395 = vmul.f32 %v357, %v391
      %v396 = vmul.f32 %v358, %v391
      %v397 = vmul.f32 %v359, %v391
      %v398 = vmul.f32 %v360, %v391
      %v399 = vmul.f32 %v361, %v391
      %v400 = vmul.f32 %v362, %v391
      %v401 = vmul.f32 %v363, %v391
      %v402 = vmul.f32 %v364, %v391
      %v403 = vmul.f32 %v365, %v391
      %v404 = vmul.f32 %v366, %v391
      %v405 = vmul.f32 %v367, %v391
      %v406 = vmul.f32 %v368, %v391
      %v407 = vmul.f32 %v369, %v391
      %v408 = vmul.f32 %v370, %v391
      %v409 = vmul.f32 %v371, %v391
      %v410 = vmul.f32 %v372, %v391
      %v411 = vmul.f32 %v373, %v391
      %v412 = vmul.f32 %v374, %v391
      %v413 = vmul.f32 %v375, %v391
      %v414 = vmul.f32 %v376, %v391
      %v415 = vmul.f32 %v377, %v391
      %v416 = vmul.f32 %v378, %v391
      %v417 = vmul.f32 %v379, %v391
      %v418 = vmul.f32 %v380, %v391
      %v419 = vmul.f32 %v381, %v391
      %v420 = vmul.f32 %v382, %v391
      %v421 = vmul.f32 %v383, %v391
      %v422 = vmul.f32 %v384, %v391
      %v423 = vmul.f32 %v385, %v391
      %v424 = vmul.f32 %v386, %v391
      %v426 = vlaneseq
      %v427 = vshrl.u32 %v426, 7
      %v428 = vsub.s32 0, %v427
      %v429 = vrot.slane %v322, %v428
      %v431 = vadd.f32 %v393, %v429
      %v432 = vadd.f32 %v394, %v429
      %v433 = vadd.f32 %v395, %v429
      %v434 = vadd.f32 %v396, %v429
      %v435 = vadd.f32 %v397, %v429
      %v436 = vadd.f32 %v398, %v429
      %v437 = vadd.f32 %v399, %v429
      %v438 = vadd.f32 %v400, %v429
      %v439 = vadd.f32 %v401, %v429
      %v440 = vadd.f32 %v402, %v429
      %v441 = vadd.f32 %v403, %v429
      %v442 = vadd.f32 %v404, %v429
      %v443 = vadd.f32 %v405, %v429
      %v444 = vadd.f32 %v406, %v429
      %v445 = vadd.f32 %v407, %v429
      %v446 = vadd.f32 %v408, %v429
      %v447 = vadd.f32 %v409, %v429
      %v448 = vadd.f32 %v410, %v429
      %v449 = vadd.f32 %v411, %v429
      %v450 = vadd.f32 %v412, %v429
      %v451 = vadd.f32 %v413, %v429
      %v452 = vadd.f32 %v414, %v429
      %v453 = vadd.f32 %v415, %v429
      %v454 = vadd.f32 %v416, %v429
      %v455 = vadd.f32 %v417, %v429
      %v456 = vadd.f32 %v418, %v429
      %v457 = vadd.f32 %v419, %v429
      %v458 = vadd.f32 %v420, %v429
      %v459 = vadd.f32 %v421, %v429
      %v460 = vadd.f32 %v422, %v429
      %v461 = vadd.f32 %v423, %v429
      %v462 = vadd.f32 %v424, %v429
      %v463 = vadd.f32 %v431, %v277
      %v464 = vadd.f32 %v432, %v278
      %v465 = vadd.f32 %v433, %v279
      %v466 = vadd.f32 %v434, %v280
      %v467 = vadd.f32 %v435, %v281
      %v468 = vadd.f32 %v436, %v282
      %v469 = vadd.f32 %v437, %v283
      %v470 = vadd.f32 %v438, %v284
      %v471 = vadd.f32 %v439, %v285
      %v472 = vadd.f32 %v440, %v286
      %v473 = vadd.f32 %v441, %v287
      %v474 = vadd.f32 %v442, %v288
      %v475 = vadd.f32 %v443, %v289
      %v476 = vadd.f32 %v444, %v290
      %v477 = vadd.f32 %v445, %v291
      %v478 = vadd.f32 %v446, %v292
      %v479 = vadd.f32 %v447, %v293
      %v480 = vadd.f32 %v448, %v294
      %v481 = vadd.f32 %v449, %v295
      %v482 = vadd.f32 %v450, %v296
      %v483 = vadd.f32 %v451, %v297
      %v484 = vadd.f32 %v452, %v298
      %v485 = vadd.f32 %v453, %v299
      %v486 = vadd.f32 %v454, %v300
      %v487 = vadd.f32 %v455, %v301
      %v488 = vadd.f32 %v456, %v302
      %v489 = vadd.f32 %v457, %v303
      %v490 = vadd.f32 %v458, %v304
      %v491 = vadd.f32 %v459, %v305
      %v492 = vadd.f32 %v460, %v306
      %v493 = vadd.f32 %v461, %v307
      %v494 = vadd.f32 %v462, %v308
      %v495 = vmax.f32 %v463, 0.0
      %v496 = vmax.f32 %v464, 0.0
      %v497 = vmax.f32 %v465, 0.0
      %v498 = vmax.f32 %v466, 0.0
      %v499 = vmax.f32 %v467, 0.0
      %v500 = vmax.f32 %v468, 0.0
      %v501 = vmax.f32 %v469, 0.0
      %v502 = vmax.f32 %v470, 0.0
      %v503 = vmax.f32 %v471, 0.0
      %v504 = vmax.f32 %v472, 0.0
      %v505 = vmax.f32 %v473, 0.0
      %v506 = vmax.f32 %v474, 0.0
      %v507 = vmax.f32 %v475, 0.0
      %v508 = vmax.f32 %v476, 0.0
      %v509 = vmax.f32 %v477, 0.0
      %v510 = vmax.f32 %v478, 0.0
      %v511 = vmax.f32 %v479, 0.0
      %v512 = vmax.f32 %v480, 0.0
      %v513 = vmax.f32 %v481, 0.0
      %v514 = vmax.f32 %v482, 0.0
      %v515 = vmax.f32 %v483, 0.0
      %v516 = vmax.f32 %v484, 0.0
      %v517 = vmax.f32 %v485, 0.0
      %v518 = vmax.f32 %v486, 0.0
      %v519 = vmax.f32 %v487, 0.0
      %v520 = vmax.f32 %v488, 0.0
      %v521 = vmax.f32 %v489, 0.0
      %v522 = vmax.f32 %v490, 0.0
      %v523 = vmax.f32 %v491, 0.0
      %v524 = vmax.f32 %v492, 0.0
      %v525 = vmax.f32 %v493, 0.0
      %v526 = vmax.f32 %v494, 0.0
      %527 = vst [vmem:[%s275] sm:$0xff] %v495
      %528 = vst [vmem:[%s275 + $0x8] sm:$0xff] %v496
      %529 = vst [vmem:[%s275 + $0x10] sm:$0xff] %v497
      %530 = vst [vmem:[%s275 + $0x18] sm:$0xff] %v498
      %531 = vst [vmem:[%s275 + $0x20] sm:$0xff] %v499
      %532 = vst [vmem:[%s275 + $0x28] sm:$0xff] %v500
      %533 = vst [vmem:[%s275 + $0x30] sm:$0xff] %v501
      %534 = vst [vmem:[%s275 + $0x38] sm:$0xff] %v502
      %535 = vst [vmem:[%s275 + $0x40] sm:$0xff] %v503
      %536 = vst [vmem:[%s275 + $0x48] sm:$0xff] %v504
      %537 = vst [vmem:[%s275 + $0x50] sm:$0xff] %v505
      %538 = vst [vmem:[%s275 + $0x58] sm:$0xff] %v506
      %539 = vst [vmem:[%s275 + $0x60] sm:$0xff] %v507
      %540 = vst [vmem:[%s275 + $0x68] sm:$0xff] %v508
      %541 = vst [vmem:[%s275 + $0x70] sm:$0xff] %v509
      %542 = vst [vmem:[%s275 + $0x78] sm:$0xff] %v510
      %543 = vst [vmem:[%s275 + $0x80] sm:$0xff] %v511
      %544 = vst [vmem:[%s275 + $0x88] sm:$0xff] %v512
      %545 = vst [vmem:[%s275 + $0x90] sm:$0xff] %v513
      %546 = vst [vmem:[%s275 + $0x98] sm:$0xff] %v514
      %547 = vst [vmem:[%s275 + $0xa0] sm:$0xff] %v515
      %548 = vst [vmem:[%s275 + $0xa8] sm:$0xff] %v516
      %549 = vst [vmem:[%s275 + $0xb0] sm:$0xff] %v517
      %550 = vst [vmem:[%s275 + $0xb8] sm:$0xff] %v518
      %551 = vst [vmem:[%s275 + $0xc0] sm:$0xff] %v519
      %552 = vst [vmem:[%s275 + $0xc8] sm:$0xff] %v520
      %553 = vst [vmem:[%s275 + $0xd0] sm:$0xff] %v521
      %554 = vst [vmem:[%s275 + $0xd8] sm:$0xff] %v522
      %555 = vst [vmem:[%s275 + $0xe0] sm:$0xff] %v523
      %556 = vst [vmem:[%s275 + $0xe8] sm:$0xff] %v524
      %557 = vst [vmem:[%s275 + $0xf0] sm:$0xff] %v525
      %558 = vst [vmem:[%s275 + $0xf8] sm:$0xff] %v526
      %s559 = smul.u32 32, %s17
      %p560 = scmp.lt.s32.totalorder %s559, 63
      %s561 = scalar_select %p560, %s559, 63
      %s562 = smul.addr %s561, 8
      %s563 = scalar_lea.vmem %s6, %s562
      // Predicated region
      $region45: #{_residual_forward_impl.7} parent=43 // pred_check
        %p564 = pneg %p171
      $region46: #{_residual_forward_impl.7} parent=43 // pred_check_branch
        %566 = sbr.rel (%p564) target = $region48
      $region47: #{_residual_forward_impl.7} parent=43 // pred_region
        %s567 = smul.u32 32, %s17
      $region48: #{_residual_forward_impl.7} parent=43 // pred_fallthru
        _
    $region44: #{_residual_forward_impl.7} parent=5 // pred_fallthru
      _
    %p568 = scmp.le.s32.totalorder 2, %s12
    // Predicated region
    $region49: #{_residual_forward_impl.7} parent=5 // pred_check
      %p569 = pneg %p568
    $region50: #{_residual_forward_impl.7} parent=5 // pred_check_branch
      %571 = sbr.rel (%p569) target = $region52
    $region51: #{_residual_forward_impl.7} parent=5 // pred_region
      %s572 = ssub.s32 %s12, 2
      // Predicated region
      $region53: #{_residual_forward_impl.7} parent=51 // pred_check
        %p573 = pneg %p177
      $region54: #{_residual_forward_impl.7} parent=51 // pred_check_branch
        %575 = sbr.rel (%p573) target = $region56
      $region55: #{_residual_forward_impl.7} parent=51 // pred_region
        %s576 = smul.u32 32, %s18
        %p577 = scmp.lt.s32.totalorder %s576, 63
        %s578 = scalar_select %p577, %s576, 63
        %s579 = smul.addr %s578, 8
        %s580 = scalar_lea.vmem %s6, %s579
      $region56: #{_residual_forward_impl.7} parent=51 // pred_fallthru
        _
    $region52: #{_residual_forward_impl.7} parent=5 // pred_fallthru
      _
  $region6: #{_residual_forward_impl.7} parent=0 // loop_footer
    %s16 = sadd.s32 1, %s12
  $region7: #{_residual_forward_impl.7} parent=0 // loop_footer_branch
    %11 = sbr.rel target = $region3
  $region8: #{_residual_forward_impl.7} parent=0 // loop_exit
    _

</llo_original>
